<compile_context>
chip_gen: v7x
topology: tpu7x:2x2x1
jax: 0.10.0
libtpu: 0.0.40
codegen_flags: <defaults>
</compile_context>

<pallas_src>
import functools

import jax
import jax.numpy as jnp
from jax.experimental import pallas as pl
from jax.experimental.pallas import tpu as pltpu

EPS = 1e-5
LANES = 128


def _cdiv(a, b):
    return (a + b - 1) // b


def _round_up(a, b):
    return _cdiv(a, b) * b


# ---------------------------------------------------------------------------
# Small-M path: the whole problem in one grid step (the module's real shape).
# ---------------------------------------------------------------------------
def _small_kernel(gamma_ref, beta_ref, w_ref, x_ref, o_ref, *, inv_count, eps):
    x = x_ref[...]                                              # (Cin, M) f32
    mean = jnp.sum(x, axis=1, keepdims=True) * inv_count        # (Cin, 1)
    d = x - mean
    var = jnp.sum(d * d, axis=1, keepdims=True) * inv_count     # two-pass, biased
    scale = gamma_ref[...] * jax.lax.rsqrt(var + eps)           # (Cin, 1)
    shift = beta_ref[...] - mean * scale                        # (Cin, 1)
    y = jnp.maximum(x * scale + shift, 0.0)                     # (Cin, M)
    # 1x1 conv == (Cout, Cin) @ (Cin, M); bf16 MXU operands, f32 accumulation.
    o_ref[...] = jnp.dot(w_ref[...], y.astype(jnp.bfloat16),
                         preferred_element_type=jnp.float32)


# ---------------------------------------------------------------------------
# Large-M path: one call, grid = (2, n_tiles); pass 0 = stats, pass 1 = apply.
# ---------------------------------------------------------------------------
def _fused_kernel(gamma_ref, beta_ref, w_ref, x_ref, o_ref,
                  sum_acc, sq_acc, scale_ref, shift_ref, *, inv_count, eps):
    p = pl.program_id(0)
    i = pl.program_id(1)
    last = pl.num_programs(1) - 1

    @pl.when((p == 0) & (i == 0))
    def _():
        sum_acc[...] = jnp.zeros_like(sum_acc)
        sq_acc[...] = jnp.zeros_like(sq_acc)

    @pl.when(p == 0)
    def _():
        # Accumulate per-lane partial sums with VPU adds only (no per-tile XLU
        # reduction, no lane-width-1 accumulator updates).
        x = x_ref[...]                                          # (Cin, m_tile)
        s = sum_acc[...]
        q = sq_acc[...]
        for j in range(x.shape[1] // LANES):                    # static unroll
            chunk = x[:, j * LANES:(j + 1) * LANES]
            s = s + chunk
            q = q + chunk * chunk
        sum_acc[...] = s
        sq_acc[...] = q

        @pl.when(i == last)
        def _():
            # Fold BN once into a per-channel scale/shift (hoisted out of the
            # per-tile apply loop).
            total = jnp.sum(sum_acc[...], axis=1, keepdims=True)
            total_sq = jnp.sum(sq_acc[...], axis=1, keepdims=True)
            mean = total * inv_count
            # TODO(synk): one-pass E[x^2]-E[x]^2 variance (clamped at 0) is
            # cancellation-prone vs PyTorch's two-pass computation when
            # |mean| >> std.
            var = jnp.maximum(total_sq * inv_count - mean * mean, 0.0)
            scale = gamma_ref[...] * jax.lax.rsqrt(var + eps)
            scale_ref[...] = scale
            shift_ref[...] = beta_ref[...] - mean * scale

    @pl.when(p == 1)
    def _():
        y = jnp.maximum(x_ref[...] * scale_ref[...] + shift_ref[...], 0.0)
        o_ref[...] = jnp.dot(w_ref[...], y.astype(jnp.bfloat16),
                             preferred_element_type=jnp.float32)


def bn_relu_conv1x1(x_nchw, gamma, beta, conv_w, *,
                    m_tile_max=2048, small_m_max=1024):
    """x_nchw: (N, Cin, H, W); conv_w: (Cout, Cin, 1, 1) (PyTorch layout)."""
    N, Cin, H, W = x_nchw.shape
    Cout = conv_w.shape[0]
    M = N * H * W

    # NCHW -> (Cin, N*H*W); free reshape for N == 1 (the module's shape).
    # TODO(synk): for N > 1 this materializes a transpose in HBM; a batched
    # index_map over (N, Cin, H*W) would avoid it if this kernel is reused.
    x2d = jnp.transpose(x_nchw, (1, 0, 2, 3)).reshape(Cin, M).astype(jnp.float32)

    gamma2d = gamma.reshape(Cin, 1).astype(jnp.float32)
    beta2d = beta.reshape(Cin, 1).astype(jnp.float32)
    w2d = conv_w.reshape(Cout, Cin).astype(jnp.bfloat16)        # (Cout, Cin)

    if M <= small_m_max:
        # --- Whole problem resident in VMEM: one call, one grid step, no pad.
        kern = functools.partial(_small_kernel, inv_count=1.0 / M, eps=EPS)
        out2d = pl.pallas_call(
            kern,
            out_shape=jax.ShapeDtypeStruct((Cout, M), jnp.float32),
            grid=(1,),
            in_specs=[
                pl.BlockSpec((Cin, 1), lambda i: (0, 0)),        # gamma
                pl.BlockSpec((Cin, 1), lambda i: (0, 0)),        # beta
                pl.BlockSpec((Cout, Cin), lambda i: (0, 0)),     # weight
                pl.BlockSpec((Cin, M), lambda i: (0, 0)),        # x (whole array)
            ],
            out_specs=pl.BlockSpec((Cout, M), lambda i: (0, 0)),
            compiler_params=pltpu.CompilerParams(
                dimension_semantics=("arbitrary",)),
        )(gamma2d, beta2d, w2d, x2d)
    else:
        # --- Tiled two-pass fused kernel; padding capped to < 128 cols/tile.
        M128 = _round_up(M, LANES)
        n_tiles = _cdiv(M128, m_tile_max)
        m_tile = _round_up(_cdiv(M128, n_tiles), LANES)
        M_pad = n_tiles * m_tile
        if M_pad != M:
            x2d = jnp.pad(x2d, ((0, 0), (0, M_pad - M)))         # zeros: stats-safe

        kern = functools.partial(_fused_kernel, inv_count=1.0 / M, eps=EPS)
        out2d = pl.pallas_call(
            kern,
            out_shape=jax.ShapeDtypeStruct((Cout, M_pad), jnp.float32),
            grid=(2, n_tiles),
            in_specs=[
                pl.BlockSpec((Cin, 1), lambda p, i: (0, 0)),       # gamma
                pl.BlockSpec((Cin, 1), lambda p, i: (0, 0)),       # beta
                pl.BlockSpec((Cout, Cin), lambda p, i: (0, 0)),    # weight (resident)
                pl.BlockSpec((Cin, m_tile), lambda p, i: (0, i)),  # x tile
            ],
            # Pass 0 pins the output block at column-block 0 (never flushed
            # with garbage mid-pass); pass 1 writes every block exactly once.
            out_specs=pl.BlockSpec((Cout, m_tile), lambda p, i: (0, p * i)),
            scratch_shapes=[
                pltpu.VMEM((Cin, LANES), jnp.float32),   # per-lane sum
                pltpu.VMEM((Cin, LANES), jnp.float32),   # per-lane sum of squares
                pltpu.VMEM((Cin, 1), jnp.float32),       # folded BN scale
                pltpu.VMEM((Cin, 1), jnp.float32),       # folded BN shift
            ],
            compiler_params=pltpu.CompilerParams(
                dimension_semantics=("arbitrary", "arbitrary")),
        )(gamma2d, beta2d, w2d, x2d)
        out2d = out2d[:, :M]

    # (Cout, N*H*W) -> (N, Cout, H, W); free for N == 1.
    return jnp.transpose(out2d.reshape(Cout, N, H, W), (1, 0, 2, 3))


def _reference(x, gamma, beta, conv_w, eps=EPS):
    # Pure-JAX reference: training-mode BN (biased batch variance) -> ReLU -> 1x1 conv.
    mean = jnp.mean(x, axis=(0, 2, 3), keepdims=True)
    var = jnp.mean((x - mean) ** 2, axis=(0, 2, 3), keepdims=True)
    xn = (x - mean) * jax.lax.rsqrt(var + eps)
    y = jnp.maximum(xn * gamma[None, :, None, None] + beta[None, :, None, None], 0.0)
    Cout, Cin = conv_w.shape[:2]
    return jnp.einsum("nchw,oc->nohw", y, conv_w.reshape(Cout, Cin))


if __name__ == "__main__":
    key = jax.random.PRNGKey(0)
    k_x, k_w, k_g, k_b, k_x2 = jax.random.split(key, 5)

    # Module shape: (1, 320, 14, 14) -> BN(320) -> ReLU -> Conv2d(320, 128, 1x1).
    N, Cin, H, W, Cout = 1, 320, 14, 14, 128
    x = jax.random.normal(k_x, (N, Cin, H, W), dtype=jnp.float32)
    gamma = 1.0 + 0.1 * jax.random.normal(k_g, (Cin,), dtype=jnp.float32)
    beta = 0.1 * jax.random.normal(k_b, (Cin,), dtype=jnp.float32)
    conv_w = jax.random.normal(k_w, (Cout, Cin, 1, 1), dtype=jnp.float32) * 0.05

    out = bn_relu_conv1x1(x, gamma, beta, conv_w)
    jax.block_until_ready(out)
    assert out.shape == (N, Cout, H, W), out.shape
    ref = _reference(x, gamma, beta, conv_w)
    # Tolerance accounts for the bf16 MXU matmul (f32 accumulation).
    err = float(jnp.max(jnp.abs(out - ref)))
    assert err < 2e-2, err

    # Also exercise the tiled (large-M) two-pass path once.
    N2, H2, W2 = 2, 64, 64
    x2 = jax.random.normal(k_x2, (N2, Cin, H2, W2), dtype=jnp.float32)
    out2 = bn_relu_conv1x1(x2, gamma, beta, conv_w)
    jax.block_until_ready(out2)
    assert out2.shape == (N2, Cout, H2, W2), out2.shape
    ref2 = _reference(x2, gamma, beta, conv_w)
    err2 = float(jnp.max(jnp.abs(out2 - ref2)))
    assert err2 < 2e-2, err2

    print("KERNEL_OK")
</pallas_src>

<mosaic_0001>
module attributes {stable_mosaic.version = 11 : i64} {
  func.func @_small_kernel(%arg0: i32, %arg1: memref<320x1xf32, #tpu.memory_space<vmem>>, %arg2: memref<320x1xf32, #tpu.memory_space<vmem>>, %arg3: memref<128x320xbf16, #tpu.memory_space<vmem>>, %arg4: memref<320x196xf32, #tpu.memory_space<vmem>>, %arg5: memref<128x196xf32, #tpu.memory_space<vmem>>) attributes {dimension_semantics = [#tpu.dimension_semantics<arbitrary>], iteration_bounds = array<i64: 1>, scalar_prefetch = 0 : i64, scratch_operands = 0 : i64, tpu.core_type = #tpu.core_type<tc>, window_params = [{pipeline_mode = #tpu.pipeline_mode<synchronous>, transform_indices = @transform_0, window_bounds = array<i64: 320, 1>}, {pipeline_mode = #tpu.pipeline_mode<synchronous>, transform_indices = @transform_1, window_bounds = array<i64: 320, 1>}, {pipeline_mode = #tpu.pipeline_mode<synchronous>, transform_indices = @transform_2, window_bounds = array<i64: 128, 320>}, {pipeline_mode = #tpu.pipeline_mode<synchronous>, transform_indices = @transform_3, window_bounds = array<i64: 320, 196>}, {pipeline_mode = #tpu.pipeline_mode<synchronous>, transform_indices = @transform_4, window_bounds = array<i64: 128, 196>}]} {
    %c0 = arith.constant 0 : index
    %c0_0 = arith.constant 0 : index
    %0 = vector.load %arg4[%c0, %c0_0] : memref<320x196xf32, #tpu.memory_space<vmem>>, vector<320x196xf32>
    %cst = arith.constant dense<0.000000e+00> : vector<320xf32>
    %1 = vector.multi_reduction <add>, %0, %cst [1] : vector<320x196xf32> to vector<320xf32>
    %2 = vector.shape_cast %1 : vector<320xf32> to vector<320x1xf32>
    %cst_1 = arith.constant 0.00510204071 : f32
    %3 = vector.broadcast %cst_1 : f32 to vector<320x1xf32>
    %4 = arith.mulf %2, %3 : vector<320x1xf32>
    %5 = vector.broadcast %4 : vector<320x1xf32> to vector<320x196xf32>
    %6 = arith.subf %0, %5 : vector<320x196xf32>
    %7 = arith.mulf %6, %6 : vector<320x196xf32>
    %cst_2 = arith.constant dense<0.000000e+00> : vector<320xf32>
    %8 = vector.multi_reduction <add>, %7, %cst_2 [1] : vector<320x196xf32> to vector<320xf32>
    %9 = vector.shape_cast %8 : vector<320xf32> to vector<320x1xf32>
    %cst_3 = arith.constant 0.00510204071 : f32
    %10 = vector.broadcast %cst_3 : f32 to vector<320x1xf32>
    %11 = arith.mulf %9, %10 : vector<320x1xf32>
    %c0_4 = arith.constant 0 : index
    %c0_5 = arith.constant 0 : index
    %12 = vector.load %arg1[%c0_4, %c0_5] : memref<320x1xf32, #tpu.memory_space<vmem>>, vector<320x1xf32>
    %cst_6 = arith.constant 9.99999974E-6 : f32
    %13 = vector.broadcast %cst_6 : f32 to vector<320x1xf32>
    %14 = arith.addf %11, %13 : vector<320x1xf32>
    %15 = math.rsqrt %14 : vector<320x1xf32>
    %16 = arith.mulf %12, %15 : vector<320x1xf32>
    %c0_7 = arith.constant 0 : index
    %c0_8 = arith.constant 0 : index
    %17 = vector.load %arg2[%c0_7, %c0_8] : memref<320x1xf32, #tpu.memory_space<vmem>>, vector<320x1xf32>
    %18 = arith.mulf %4, %16 : vector<320x1xf32>
    %19 = arith.subf %17, %18 : vector<320x1xf32>
    %20 = vector.broadcast %16 : vector<320x1xf32> to vector<320x196xf32>
    %21 = arith.mulf %0, %20 : vector<320x196xf32>
    %22 = vector.broadcast %19 : vector<320x1xf32> to vector<320x196xf32>
    %23 = arith.addf %21, %22 : vector<320x196xf32>
    %cst_9 = arith.constant 0.000000e+00 : f32
    %24 = vector.broadcast %cst_9 : f32 to vector<320x196xf32>
    %25 = arith.maximumf %23, %24 : vector<320x196xf32>
    %c0_10 = arith.constant 0 : index
    %c0_11 = arith.constant 0 : index
    %26 = vector.load %arg3[%c0_10, %c0_11] : memref<128x320xbf16, #tpu.memory_space<vmem>>, vector<128x320xbf16>
    %27 = arith.truncf %25 : vector<320x196xf32> to vector<320x196xbf16>
    %cst_12 = arith.constant dense<0.000000e+00> : vector<128x196xf32>
    %28 = tpu.matmul %26, %27, %cst_12 {dimension_numbers = #tpu.dot_dimension_numbers<[1], [0], [0], [1], [0, 0, 1, 1], [], []>} : vector<128x320xbf16>, vector<320x196xbf16>, vector<128x196xf32> -> vector<128x196xf32>
    %c0_13 = arith.constant 0 : index
    %c0_14 = arith.constant 0 : index
    %29 = vector.load %arg5[%c0_13, %c0_14] : memref<128x196xf32, #tpu.memory_space<vmem>>, vector<128x196xf32>
    tpu.vector_store %arg5[%c0_13, %c0_14], %28 {strides = array<i32>} : memref<128x196xf32, #tpu.memory_space<vmem>>, vector<128x196xf32>,
    return
  }
  func.func @transform_0(%arg0: i32) -> (i32, i32) {
    %c0_i32 = arith.constant 0 : i32
    %c0_i32_0 = arith.constant 0 : i32
    %c0_i32_1 = arith.constant 0 : i32
    return %c0_i32, %c0_i32_0 : i32, i32
  }
  func.func @transform_1(%arg0: i32) -> (i32, i32) {
    %c0_i32 = arith.constant 0 : i32
    %c0_i32_0 = arith.constant 0 : i32
    %c0_i32_1 = arith.constant 0 : i32
    return %c0_i32, %c0_i32_0 : i32, i32
  }
  func.func @transform_2(%arg0: i32) -> (i32, i32) {
    %c0_i32 = arith.constant 0 : i32
    %c0_i32_0 = arith.constant 0 : i32
    %c0_i32_1 = arith.constant 0 : i32
    return %c0_i32, %c0_i32_0 : i32, i32
  }
  func.func @transform_3(%arg0: i32) -> (i32, i32) {
    %c0_i32 = arith.constant 0 : i32
    %c0_i32_0 = arith.constant 0 : i32
    %c0_i32_1 = arith.constant 0 : i32
    return %c0_i32, %c0_i32_0 : i32, i32
  }
  func.func @transform_4(%arg0: i32) -> (i32, i32) {
    %c0_i32 = arith.constant 0 : i32
    %c0_i32_0 = arith.constant 0 : i32
    %c0_i32_1 = arith.constant 0 : i32
    return %c0_i32, %c0_i32_0 : i32, i32
  }
}

</mosaic_0001>

<llo_original>
// kernel: tpu_custom_call.1
$region0: #{tpu_custom_call.1}
  #allocation0 [shape = 'u32[]', space=smem, size = 0x4, offset = 0x4, fixed_abs, tag = 'smem constant byte address 0x4 - core index']
  #allocation1 [shape = 'u32[144,128]{1,0:T(1,128)}', space=vmem, size = 0x12000, scoped, tag = 'internal scratch']
  %s0 = inlined_call_operand.vmem [shape: f32[320,1], index: 0, kind: input, shape index: {}]
  %s1 = inlined_call_operand.vmem [shape: f32[320,1], index: 1, kind: input, shape index: {}]
  %s2 = inlined_call_operand.vmem [shape: bf16[128,320], index: 2, kind: input, shape index: {}]
  %s3 = inlined_call_operand.vmem [shape: f32[320,196], index: 3, kind: input, shape index: {}]
  %s4 = inlined_call_operand.vmem [shape: f32[128,196], index: 4, kind: output, shape index: {}]
  %s5 = sld [smem:[#allocation0]]
  $region26: #{tpu_custom_call.1} parent=0
    _
  %s7 = ssub.s32 1, %s5
  %s8 = scalar_select 0, %s7, %s5
  // Predicated region
  $region2: #{tpu_custom_call.1} parent=0 // pred_check
    _
  $region3: #{tpu_custom_call.1} parent=0 // pred_check_branch
    %10 = sbr.rel (0) target = $region5
  $region4: #{tpu_custom_call.1} parent=0 // pred_region
    _
  $region5: #{tpu_custom_call.1} parent=0 // pred_fallthru
    _
  // Predicated region
  $region6: #{tpu_custom_call.1} parent=0 // pred_check
    _
  $region7: #{tpu_custom_call.1} parent=0 // pred_check_branch
    %12 = sbr.rel (0) target = $region9
  $region8: #{tpu_custom_call.1} parent=0 // pred_region
    _
  $region9: #{tpu_custom_call.1} parent=0 // pred_fallthru
    _
  // Predicated region
  $region10: #{tpu_custom_call.1} parent=0 // pred_check
    _
  $region11: #{tpu_custom_call.1} parent=0 // pred_check_branch
    %14 = sbr.rel (0) target = $region13
  $region12: #{tpu_custom_call.1} parent=0 // pred_region
    _
  $region13: #{tpu_custom_call.1} parent=0 // pred_fallthru
    _
  // Predicated region
  $region14: #{tpu_custom_call.1} parent=0 // pred_check
    _
  $region15: #{tpu_custom_call.1} parent=0 // pred_check_branch
    %16 = sbr.rel (0) target = $region17
  $region16: #{tpu_custom_call.1} parent=0 // pred_region
    _
  $region17: #{tpu_custom_call.1} parent=0 // pred_fallthru
    _
  %v18 = vld [vmem:[%s3] sm:$0xff]
  %v19 = vld [vmem:[%s3 + $0x8] sm:$0xff]
  %v20 = vld [vmem:[%s3 + $0x10] sm:$0xff]
  %v21 = vld [vmem:[%s3 + $0x18] sm:$0xff]
  %v22 = vld [vmem:[%s3 + $0x20] sm:$0xff]
  %v23 = vld [vmem:[%s3 + $0x28] sm:$0xff]
  %v24 = vld [vmem:[%s3 + $0x30] sm:$0xff]
  %v25 = vld [vmem:[%s3 + $0x38] sm:$0xff]
  %v26 = vld [vmem:[%s3 + $0x40] sm:$0xff]
  %v27 = vld [vmem:[%s3 + $0x48] sm:$0xff]
  %v28 = vld [vmem:[%s3 + $0x50] sm:$0xff]
  %v29 = vld [vmem:[%s3 + $0x58] sm:$0xff]
  %v30 = vld [vmem:[%s3 + $0x60] sm:$0xff]
  %v31 = vld [vmem:[%s3 + $0x68] sm:$0xff]
  %v32 = vld [vmem:[%s3 + $0x70] sm:$0xff]
  %v33 = vld [vmem:[%s3 + $0x78] sm:$0xff]
  %v34 = vld [vmem:[%s3 + $0x80] sm:$0xff]
  %v35 = vld [vmem:[%s3 + $0x88] sm:$0xff]
  %v36 = vld [vmem:[%s3 + $0x90] sm:$0xff]
  %v37 = vld [vmem:[%s3 + $0x98] sm:$0xff]
  %v38 = vld [vmem:[%s3 + $0xa0] sm:$0xff]
  %v39 = vld [vmem:[%s3 + $0xa8] sm:$0xff]
  %v40 = vld [vmem:[%s3 + $0xb0] sm:$0xff]
  %v41 = vld [vmem:[%s3 + $0xb8] sm:$0xff]
  %v42 = vld [vmem:[%s3 + $0xc0] sm:$0xff]
  %v43 = vld [vmem:[%s3 + $0xc8] sm:$0xff]
  %v44 = vld [vmem:[%s3 + $0xd0] sm:$0xff]
  %v45 = vld [vmem:[%s3 + $0xd8] sm:$0xff]
  %v46 = vld [vmem:[%s3 + $0xe0] sm:$0xff]
  %v47 = vld [vmem:[%s3 + $0xe8] sm:$0xff]
  %v48 = vld [vmem:[%s3 + $0xf0] sm:$0xff]
  %v49 = vld [vmem:[%s3 + $0xf8] sm:$0xff]
  %v50 = vld [vmem:[%s3 + $0x100] sm:$0xff]
  %v51 = vld [vmem:[%s3 + $0x108] sm:$0xff]
  %v52 = vld [vmem:[%s3 + $0x110] sm:$0xff]
  %v53 = vld [vmem:[%s3 + $0x118] sm:$0xff]
  %v54 = vld [vmem:[%s3 + $0x120] sm:$0xff]
  %v55 = vld [vmem:[%s3 + $0x128] sm:$0xff]
  %v56 = vld [vmem:[%s3 + $0x130] sm:$0xff]
  %v57 = vld [vmem:[%s3 + $0x138] sm:$0xff]
  %v58 = vld [vmem:[%s3 + $0x140] sm:$0xff]
  %v59 = vld [vmem:[%s3 + $0x148] sm:$0xff]
  %v60 = vld [vmem:[%s3 + $0x150] sm:$0xff]
  %v61 = vld [vmem:[%s3 + $0x158] sm:$0xff]
  %v62 = vld [vmem:[%s3 + $0x160] sm:$0xff]
  %v63 = vld [vmem:[%s3 + $0x168] sm:$0xff]
  %v64 = vld [vmem:[%s3 + $0x170] sm:$0xff]
  %v65 = vld [vmem:[%s3 + $0x178] sm:$0xff]
  %v66 = vld [vmem:[%s3 + $0x180] sm:$0xff]
  %v67 = vld [vmem:[%s3 + $0x188] sm:$0xff]
  %v68 = vld [vmem:[%s3 + $0x190] sm:$0xff]
  %v69 = vld [vmem:[%s3 + $0x198] sm:$0xff]
  %v70 = vld [vmem:[%s3 + $0x1a0] sm:$0xff]
  %v71 = vld [vmem:[%s3 + $0x1a8] sm:$0xff]
  %v72 = vld [vmem:[%s3 + $0x1b0] sm:$0xff]
  %v73 = vld [vmem:[%s3 + $0x1b8] sm:$0xff]
  %v74 = vld [vmem:[%s3 + $0x1c0] sm:$0xff]
  %v75 = vld [vmem:[%s3 + $0x1c8] sm:$0xff]
  %v76 = vld [vmem:[%s3 + $0x1d0] sm:$0xff]
  %v77 = vld [vmem:[%s3 + $0x1d8] sm:$0xff]
  %v78 = vld [vmem:[%s3 + $0x1e0] sm:$0xff]
  %v79 = vld [vmem:[%s3 + $0x1e8] sm:$0xff]
  %v80 = vld [vmem:[%s3 + $0x1f0] sm:$0xff]
  %v81 = vld [vmem:[%s3 + $0x1f8] sm:$0xff]
  %v82 = vld [vmem:[%s3 + $0x200] sm:$0xff]
  %v83 = vld [vmem:[%s3 + $0x208] sm:$0xff]
  %v84 = vld [vmem:[%s3 + $0x210] sm:$0xff]
  %v85 = vld [vmem:[%s3 + $0x218] sm:$0xff]
  %v86 = vld [vmem:[%s3 + $0x220] sm:$0xff]
  %v87 = vld [vmem:[%s3 + $0x228] sm:$0xff]
  %v88 = vld [vmem:[%s3 + $0x230] sm:$0xff]
  %v89 = vld [vmem:[%s3 + $0x238] sm:$0xff]
  %v90 = vld [vmem:[%s3 + $0x240] sm:$0xff]
  %v91 = vld [vmem:[%s3 + $0x248] sm:$0xff]
  %v92 = vld [vmem:[%s3 + $0x250] sm:$0xff]
  %v93 = vld [vmem:[%s3 + $0x258] sm:$0xff]
  %v94 = vld [vmem:[%s3 + $0x260] sm:$0xff]
  %v95 = vld [vmem:[%s3 + $0x268] sm:$0xff]
  %v96 = vld [vmem:[%s3 + $0x270] sm:$0xff]
  %v97 = vld [vmem:[%s3 + $0x278] sm:$0xff]
  %vm98 = vcmask 556032
  %v99 = vsel %vm98, %v19, 0.0
  %v100 = vadd.f32 %v18, %v99
  %101 = vadd.xlane.f32.xlu0 %v100
  %v102 = vpop.xlane.xlu0 %101
  %v103 = vsel %vm98, %v21, 0.0
  %v104 = vadd.f32 %v20, %v103
  %105 = vadd.xlane.f32.xlu0 %v104
  %v106 = vpop.xlane.xlu0 %105
  %v107 = vsel %vm98, %v23, 0.0
  %v108 = vadd.f32 %v22, %v107
  %109 = vadd.xlane.f32.xlu0 %v108
  %v110 = vpop.xlane.xlu0 %109
  %v111 = vsel %vm98, %v25, 0.0
  %v112 = vadd.f32 %v24, %v111
  %113 = vadd.xlane.f32.xlu0 %v112
  %v114 = vpop.xlane.xlu0 %113
  %v115 = vsel %vm98, %v27, 0.0
  %v116 = vadd.f32 %v26, %v115
  %117 = vadd.xlane.f32.xlu0 %v116
  %v118 = vpop.xlane.xlu0 %117
  %v119 = vsel %vm98, %v29, 0.0
  %v120 = vadd.f32 %v28, %v119
  %121 = vadd.xlane.f32.xlu0 %v120
  %v122 = vpop.xlane.xlu0 %121
  %v123 = vsel %vm98, %v31, 0.0
  %v124 = vadd.f32 %v30, %v123
  %125 = vadd.xlane.f32.xlu0 %v124
  %v126 = vpop.xlane.xlu0 %125
  %v127 = vsel %vm98, %v33, 0.0
  %v128 = vadd.f32 %v32, %v127
  %129 = vadd.xlane.f32.xlu0 %v128
  %v130 = vpop.xlane.xlu0 %129
  %v131 = vsel %vm98, %v35, 0.0
  %v132 = vadd.f32 %v34, %v131
  %133 = vadd.xlane.f32.xlu0 %v132
  %v134 = vpop.xlane.xlu0 %133
  %v135 = vsel %vm98, %v37, 0.0
  %v136 = vadd.f32 %v36, %v135
  %137 = vadd.xlane.f32.xlu0 %v136
  %v138 = vpop.xlane.xlu0 %137
  %v139 = vsel %vm98, %v39, 0.0
  %v140 = vadd.f32 %v38, %v139
  %141 = vadd.xlane.f32.xlu0 %v140
  %v142 = vpop.xlane.xlu0 %141
  %v143 = vsel %vm98, %v41, 0.0
  %v144 = vadd.f32 %v40, %v143
  %145 = vadd.xlane.f32.xlu0 %v144
  %v146 = vpop.xlane.xlu0 %145
  %v147 = vsel %vm98, %v43, 0.0
  %v148 = vadd.f32 %v42, %v147
  %149 = vadd.xlane.f32.xlu0 %v148
  %v150 = vpop.xlane.xlu0 %149
  %v151 = vsel %vm98, %v45, 0.0
  %v152 = vadd.f32 %v44, %v151
  %153 = vadd.xlane.f32.xlu0 %v152
  %v154 = vpop.xlane.xlu0 %153
  %v155 = vsel %vm98, %v47, 0.0
  %v156 = vadd.f32 %v46, %v155
  %157 = vadd.xlane.f32.xlu0 %v156
  %v158 = vpop.xlane.xlu0 %157
  %v159 = vsel %vm98, %v49, 0.0
  %v160 = vadd.f32 %v48, %v159
  %161 = vadd.xlane.f32.xlu0 %v160
  %v162 = vpop.xlane.xlu0 %161
  %v163 = vsel %vm98, %v51, 0.0
  %v164 = vadd.f32 %v50, %v163
  %165 = vadd.xlane.f32.xlu0 %v164
  %v166 = vpop.xlane.xlu0 %165
  %v167 = vsel %vm98, %v53, 0.0
  %v168 = vadd.f32 %v52, %v167
  %169 = vadd.xlane.f32.xlu0 %v168
  %v170 = vpop.xlane.xlu0 %169
  %v171 = vsel %vm98, %v55, 0.0
  %v172 = vadd.f32 %v54, %v171
  %173 = vadd.xlane.f32.xlu0 %v172
  %v174 = vpop.xlane.xlu0 %173
  %v175 = vsel %vm98, %v57, 0.0
  %v176 = vadd.f32 %v56, %v175
  %177 = vadd.xlane.f32.xlu0 %v176
  %v178 = vpop.xlane.xlu0 %177
  %v179 = vsel %vm98, %v59, 0.0
  %v180 = vadd.f32 %v58, %v179
  %181 = vadd.xlane.f32.xlu0 %v180
  %v182 = vpop.xlane.xlu0 %181
  %v183 = vsel %vm98, %v61, 0.0
  %v184 = vadd.f32 %v60, %v183
  %185 = vadd.xlane.f32.xlu0 %v184
  %v186 = vpop.xlane.xlu0 %185
  %v187 = vsel %vm98, %v63, 0.0
  %v188 = vadd.f32 %v62, %v187
  %189 = vadd.xlane.f32.xlu0 %v188
  %v190 = vpop.xlane.xlu0 %189
  %v191 = vsel %vm98, %v65, 0.0
  %v192 = vadd.f32 %v64, %v191
  %193 = vadd.xlane.f32.xlu0 %v192
  %v194 = vpop.xlane.xlu0 %193
  %v195 = vsel %vm98, %v67, 0.0
  %v196 = vadd.f32 %v66, %v195
  %197 = vadd.xlane.f32.xlu0 %v196
  %v198 = vpop.xlane.xlu0 %197
  %v199 = vsel %vm98, %v69, 0.0
  %v200 = vadd.f32 %v68, %v199
  %201 = vadd.xlane.f32.xlu0 %v200
  %v202 = vpop.xlane.xlu0 %201
  %v203 = vsel %vm98, %v71, 0.0
  %v204 = vadd.f32 %v70, %v203
  %205 = vadd.xlane.f32.xlu0 %v204
  %v206 = vpop.xlane.xlu0 %205
  %v207 = vsel %vm98, %v73, 0.0
  %v208 = vadd.f32 %v72, %v207
  %209 = vadd.xlane.f32.xlu0 %v208
  %v210 = vpop.xlane.xlu0 %209
  %v211 = vsel %vm98, %v75, 0.0
  %v212 = vadd.f32 %v74, %v211
  %213 = vadd.xlane.f32.xlu0 %v212
  %v214 = vpop.xlane.xlu0 %213
  %v215 = vsel %vm98, %v77, 0.0
  %v216 = vadd.f32 %v76, %v215
  %217 = vadd.xlane.f32.xlu0 %v216
  %v218 = vpop.xlane.xlu0 %217
  %v219 = vsel %vm98, %v79, 0.0
  %v220 = vadd.f32 %v78, %v219
  %221 = vadd.xlane.f32.xlu0 %v220
  %v222 = vpop.xlane.xlu0 %221
  %v223 = vsel %vm98, %v81, 0.0
  %v224 = vadd.f32 %v80, %v223
  %225 = vadd.xlane.f32.xlu0 %v224
  %v226 = vpop.xlane.xlu0 %225
  %v227 = vsel %vm98, %v83, 0.0
  %v228 = vadd.f32 %v82, %v227
  %229 = vadd.xlane.f32.xlu0 %v228
  %v230 = vpop.xlane.xlu0 %229
  %v231 = vsel %vm98, %v85, 0.0
  %v232 = vadd.f32 %v84, %v231
  %233 = vadd.xlane.f32.xlu0 %v232
  %v234 = vpop.xlane.xlu0 %233
  %v235 = vsel %vm98, %v87, 0.0
  %v236 = vadd.f32 %v86, %v235
  %237 = vadd.xlane.f32.xlu0 %v236
  %v238 = vpop.xlane.xlu0 %237
  %v239 = vsel %vm98, %v89, 0.0
  %v240 = vadd.f32 %v88, %v239
  %241 = vadd.xlane.f32.xlu0 %v240
  %v242 = vpop.xlane.xlu0 %241
  %v243 = vsel %vm98, %v91, 0.0
  %v244 = vadd.f32 %v90, %v243
  %245 = vadd.xlane.f32.xlu0 %v244
  %v246 = vpop.xlane.xlu0 %245
  %v247 = vsel %vm98, %v93, 0.0
  %v248 = vadd.f32 %v92, %v247
  %249 = vadd.xlane.f32.xlu0 %v248
  %v250 = vpop.xlane.xlu0 %249
  %v251 = vsel %vm98, %v95, 0.0
  %v252 = vadd.f32 %v94, %v251
  %253 = vadd.xlane.f32.xlu0 %v252
  %v254 = vpop.xlane.xlu0 %253
  %v255 = vsel %vm98, %v97, 0.0
  %v256 = vadd.f32 %v96, %v255
  %257 = vadd.xlane.f32.xlu0 %v256
  %v258 = vpop.xlane.xlu0 %257
  %v259 = vmul.f32 %v102, 0.0051020407
  %v260 = vmul.f32 %v106, 0.0051020407
  %v261 = vmul.f32 %v110, 0.0051020407
  %v262 = vmul.f32 %v114, 0.0051020407
  %v263 = vmul.f32 %v118, 0.0051020407
  %v264 = vmul.f32 %v122, 0.0051020407
  %v265 = vmul.f32 %v126, 0.0051020407
  %v266 = vmul.f32 %v130, 0.0051020407
  %v267 = vmul.f32 %v134, 0.0051020407
  %v268 = vmul.f32 %v138, 0.0051020407
  %v269 = vmul.f32 %v142, 0.0051020407
  %v270 = vmul.f32 %v146, 0.0051020407
  %v271 = vmul.f32 %v150, 0.0051020407
  %v272 = vmul.f32 %v154, 0.0051020407
  %v273 = vmul.f32 %v158, 0.0051020407
  %v274 = vmul.f32 %v162, 0.0051020407
  %v275 = vmul.f32 %v166, 0.0051020407
  %v276 = vmul.f32 %v170, 0.0051020407
  %v277 = vmul.f32 %v174, 0.0051020407
  %v278 = vmul.f32 %v178, 0.0051020407
  %v279 = vmul.f32 %v182, 0.0051020407
  %v280 = vmul.f32 %v186, 0.0051020407
  %v281 = vmul.f32 %v190, 0.0051020407
  %v282 = vmul.f32 %v194, 0.0051020407
  %v283 = vmul.f32 %v198, 0.0051020407
  %v284 = vmul.f32 %v202, 0.0051020407
  %v285 = vmul.f32 %v206, 0.0051020407
  %v286 = vmul.f32 %v210, 0.0051020407
  %v287 = vmul.f32 %v214, 0.0051020407
  %v288 = vmul.f32 %v218, 0.0051020407
  %v289 = vmul.f32 %v222, 0.0051020407
  %v290 = vmul.f32 %v226, 0.0051020407
  %v291 = vmul.f32 %v230, 0.0051020407
  %v292 = vmul.f32 %v234, 0.0051020407
  %v293 = vmul.f32 %v238, 0.0051020407
  %v294 = vmul.f32 %v242, 0.0051020407
  %v295 = vmul.f32 %v246, 0.0051020407
  %v296 = vmul.f32 %v250, 0.0051020407
  %v297 = vmul.f32 %v254, 0.0051020407
  %v298 = vmul.f32 %v258, 0.0051020407
  %v299 = vsub.f32 %v18, %v259
  %v300 = vsub.f32 %v19, %v259
  %v301 = vsub.f32 %v20, %v260
  %v302 = vsub.f32 %v21, %v260
  %v303 = vsub.f32 %v22, %v261
  %v304 = vsub.f32 %v23, %v261
  %v305 = vsub.f32 %v24, %v262
  %v306 = vsub.f32 %v25, %v262
  %v307 = vsub.f32 %v26, %v263
  %v308 = vsub.f32 %v27, %v263
  %v309 = vsub.f32 %v28, %v264
  %v310 = vsub.f32 %v29, %v264
  %v311 = vsub.f32 %v30, %v265
  %v312 = vsub.f32 %v31, %v265
  %v313 = vsub.f32 %v32, %v266
  %v314 = vsub.f32 %v33, %v266
  %v315 = vsub.f32 %v34, %v267
  %v316 = vsub.f32 %v35, %v267
  %v317 = vsub.f32 %v36, %v268
  %v318 = vsub.f32 %v37, %v268
  %v319 = vsub.f32 %v38, %v269
  %v320 = vsub.f32 %v39, %v269
  %v321 = vsub.f32 %v40, %v270
  %v322 = vsub.f32 %v41, %v270
  %v323 = vsub.f32 %v42, %v271
  %v324 = vsub.f32 %v43, %v271
  %v325 = vsub.f32 %v44, %v272
  %v326 = vsub.f32 %v45, %v272
  %v327 = vsub.f32 %v46, %v273
  %v328 = vsub.f32 %v47, %v273
  %v329 = vsub.f32 %v48, %v274
  %v330 = vsub.f32 %v49, %v274
  %v331 = vsub.f32 %v50, %v275
  %v332 = vsub.f32 %v51, %v275
  %v333 = vsub.f32 %v52, %v276
  %v334 = vsub.f32 %v53, %v276
  %v335 = vsub.f32 %v54, %v277
  %v336 = vsub.f32 %v55, %v277
  %v337 = vsub.f32 %v56, %v278
  %v338 = vsub.f32 %v57, %v278
  %v339 = vsub.f32 %v58, %v279
  %v340 = vsub.f32 %v59, %v279
  %v341 = vsub.f32 %v60, %v280
  %v342 = vsub.f32 %v61, %v280
  %v343 = vsub.f32 %v62, %v281
  %v344 = vsub.f32 %v63, %v281
  %v345 = vsub.f32 %v64, %v282
  %v346 = vsub.f32 %v65, %v282
  %v347 = vsub.f32 %v66, %v283
  %v348 = vsub.f32 %v67, %v283
  %v349 = vsub.f32 %v68, %v284
  %v350 = vsub.f32 %v69, %v284
  %v351 = vsub.f32 %v70, %v285
  %v352 = vsub.f32 %v71, %v285
  %v353 = vsub.f32 %v72, %v286
  %v354 = vsub.f32 %v73, %v286
  %v355 = vsub.f32 %v74, %v287
  %v356 = vsub.f32 %v75, %v287
  %v357 = vsub.f32 %v76, %v288
  %v358 = vsub.f32 %v77, %v288
  %v359 = vsub.f32 %v78, %v289
  %v360 = vsub.f32 %v79, %v289
  %v361 = vsub.f32 %v80, %v290
  %v362 = vsub.f32 %v81, %v290
  %v363 = vsub.f32 %v82, %v291
  %v364 = vsub.f32 %v83, %v291
  %v365 = vsub.f32 %v84, %v292
  %v366 = vsub.f32 %v85, %v292
  %v367 = vsub.f32 %v86, %v293
  %v368 = vsub.f32 %v87, %v293
  %v369 = vsub.f32 %v88, %v294
  %v370 = vsub.f32 %v89, %v294
  %v371 = vsub.f32 %v90, %v295
  %v372 = vsub.f32 %v91, %v295
  %v373 = vsub.f32 %v92, %v296
  %v374 = vsub.f32 %v93, %v296
  %v375 = vsub.f32 %v94, %v297
  %v376 = vsub.f32 %v95, %v297
  %v377 = vsub.f32 %v96, %v298
  %v378 = vsub.f32 %v97, %v298
  %v379 = vmul.f32 %v299, %v299
  %v380 = vmul.f32 %v300, %v300
  %v381 = vmul.f32 %v301, %v301
  %v382 = vmul.f32 %v302, %v302
  %v383 = vmul.f32 %v303, %v303
  %v384 = vmul.f32 %v304, %v304
  %v385 = vmul.f32 %v305, %v305
  %v386 = vmul.f32 %v306, %v306
  %v387 = vmul.f32 %v307, %v307
  %v388 = vmul.f32 %v308, %v308
  %v389 = vmul.f32 %v309, %v309
  %v390 = vmul.f32 %v310, %v310
  %v391 = vmul.f32 %v311, %v311
  %v392 = vmul.f32 %v312, %v312
  %v393 = vmul.f32 %v313, %v313
  %v394 = vmul.f32 %v314, %v314
  %v395 = vmul.f32 %v315, %v315
  %v396 = vmul.f32 %v316, %v316
  %v397 = vmul.f32 %v317, %v317
  %v398 = vmul.f32 %v318, %v318
  %v399 = vmul.f32 %v319, %v319
  %v400 = vmul.f32 %v320, %v320
  %v401 = vmul.f32 %v321, %v321
  %v402 = vmul.f32 %v322, %v322
  %v403 = vmul.f32 %v323, %v323
  %v404 = vmul.f32 %v324, %v324
  %v405 = vmul.f32 %v325, %v325
  %v406 = vmul.f32 %v326, %v326
  %v407 = vmul.f32 %v327, %v327
  %v408 = vmul.f32 %v328, %v328
  %v409 = vmul.f32 %v329, %v329
  %v410 = vmul.f32 %v330, %v330
  %v411 = vmul.f32 %v331, %v331
  %v412 = vmul.f32 %v332, %v332
  %v413 = vmul.f32 %v333, %v333
  %v414 = vmul.f32 %v334, %v334
  %v415 = vmul.f32 %v335, %v335
  %v416 = vmul.f32 %v336, %v336
  %v417 = vmul.f32 %v337, %v337
  %v418 = vmul.f32 %v338, %v338
  %v419 = vmul.f32 %v339, %v339
  %v420 = vmul.f32 %v340, %v340
  %v421 = vmul.f32 %v341, %v341
  %v422 = vmul.f32 %v342, %v342
  %v423 = vmul.f32 %v343, %v343
  %v424 = vmul.f32 %v344, %v344
  %v425 = vmul.f32 %v345, %v345
  %v426 = vmul.f32 %v346, %v346
  %v427 = vmul.f32 %v347, %v347
  %v428 = vmul.f32 %v348, %v348
  %v429 = vmul.f32 %v349, %v349
  %v430 = vmul.f32 %v350, %v350
  %v431 = vmul.f32 %v351, %v351
  %v432 = vmul.f32 %v352, %v352
  %v433 = vmul.f32 %v353, %v353
  %v434 = vmul.f32 %v354, %v354
  %v435 = vmul.f32 %v355, %v355
  %v436 = vmul.f32 %v356, %v356
  %v437 = vmul.f32 %v357, %v357
  %v438 = vmul.f32 %v358, %v358
  %v439 = vmul.f32 %v359, %v359
  %v440 = vmul.f32 %v360, %v360
  %v441 = vmul.f32 %v361, %v361
  %v442 = vmul.f32 %v362, %v362
  %v443 = vmul.f32 %v363, %v363
  %v444 = vmul.f32 %v364, %v364
  %v445 = vmul.f32 %v365, %v365
  %v446 = vmul.f32 %v366, %v366
  %v447 = vmul.f32 %v367, %v367
  %v448 = vmul.f32 %v368, %v368
  %v449 = vmul.f32 %v369, %v369
  %v450 = vmul.f32 %v370, %v370
  %v451 = vmul.f32 %v371, %v371
  %v452 = vmul.f32 %v372, %v372
  %v453 = vmul.f32 %v373, %v373
  %v454 = vmul.f32 %v374, %v374
  %v455 = vmul.f32 %v375, %v375
  %v456 = vmul.f32 %v376, %v376
  %v457 = vmul.f32 %v377, %v377
  %v458 = vmul.f32 %v378, %v378
  %v459 = vsel %vm98, %v380, 0.0
  %v460 = vadd.f32 %v379, %v459
  %461 = vadd.xlane.f32.xlu0 %v460
  %v462 = vpop.xlane.xlu0 %461
  %v463 = vsel %vm98, %v382, 0.0
  %v464 = vadd.f32 %v381, %v463
  %465 = vadd.xlane.f32.xlu0 %v464
  %v466 = vpop.xlane.xlu0 %465
  %v467 = vsel %vm98, %v384, 0.0
  %v468 = vadd.f32 %v383, %v467
  %469 = vadd.xlane.f32.xlu0 %v468
  %v470 = vpop.xlane.xlu0 %469
  %v471 = vsel %vm98, %v386, 0.0
  %v472 = vadd.f32 %v385, %v471
  %473 = vadd.xlane.f32.xlu0 %v472
  %v474 = vpop.xlane.xlu0 %473
  %v475 = vsel %vm98, %v388, 0.0
  %v476 = vadd.f32 %v387, %v475
  %477 = vadd.xlane.f32.xlu0 %v476
  %v478 = vpop.xlane.xlu0 %477
  %v479 = vsel %vm98, %v390, 0.0
  %v480 = vadd.f32 %v389, %v479
  %481 = vadd.xlane.f32.xlu0 %v480
  %v482 = vpop.xlane.xlu0 %481
  %v483 = vsel %vm98, %v392, 0.0
  %v484 = vadd.f32 %v391, %v483
  %485 = vadd.xlane.f32.xlu0 %v484
  %v486 = vpop.xlane.xlu0 %485
  %v487 = vsel %vm98, %v394, 0.0
  %v488 = vadd.f32 %v393, %v487
  %489 = vadd.xlane.f32.xlu0 %v488
  %v490 = vpop.xlane.xlu0 %489
  %v491 = vsel %vm98, %v396, 0.0
  %v492 = vadd.f32 %v395, %v491
  %493 = vadd.xlane.f32.xlu0 %v492
  %v494 = vpop.xlane.xlu0 %493
  %v495 = vsel %vm98, %v398, 0.0
  %v496 = vadd.f32 %v397, %v495
  %497 = vadd.xlane.f32.xlu0 %v496
  %v498 = vpop.xlane.xlu0 %497
  %v499 = vsel %vm98, %v400, 0.0
  %v500 = vadd.f32 %v399, %v499
  %501 = vadd.xlane.f32.xlu0 %v500
  %v502 = vpop.xlane.xlu0 %501
  %v503 = vsel %vm98, %v402, 0.0
  %v504 = vadd.f32 %v401, %v503
  %505 = vadd.xlane.f32.xlu0 %v504
  %v506 = vpop.xlane.xlu0 %505
  %v507 = vsel %vm98, %v404, 0.0
  %v508 = vadd.f32 %v403, %v507
  %509 = vadd.xlane.f32.xlu0 %v508
  %v510 = vpop.xlane.xlu0 %509
  %v511 = vsel %vm98, %v406, 0.0
  %v512 = vadd.f32 %v405, %v511
  %513 = vadd.xlane.f32.xlu0 %v512
  %v514 = vpop.xlane.xlu0 %513
  %v515 = vsel %vm98, %v408, 0.0
  %v516 = vadd.f32 %v407, %v515
  %517 = vadd.xlane.f32.xlu0 %v516
  %v518 = vpop.xlane.xlu0 %517
  %v519 = vsel %vm98, %v410, 0.0
  %v520 = vadd.f32 %v409, %v519
  %521 = vadd.xlane.f32.xlu0 %v520
  %v522 = vpop.xlane.xlu0 %521
  %v523 = vsel %vm98, %v412, 0.0
  %v524 = vadd.f32 %v411, %v523
  %525 = vadd.xlane.f32.xlu0 %v524
  %v526 = vpop.xlane.xlu0 %525
  %v527 = vsel %vm98, %v414, 0.0
  %v528 = vadd.f32 %v413, %v527
  %529 = vadd.xlane.f32.xlu0 %v528
  %v530 = vpop.xlane.xlu0 %529
  %v531 = vsel %vm98, %v416, 0.0
  %v532 = vadd.f32 %v415, %v531
  %533 = vadd.xlane.f32.xlu0 %v532
  %v534 = vpop.xlane.xlu0 %533
  %v535 = vsel %vm98, %v418, 0.0
  %v536 = vadd.f32 %v417, %v535
  %537 = vadd.xlane.f32.xlu0 %v536
  %v538 = vpop.xlane.xlu0 %537
  %v539 = vsel %vm98, %v420, 0.0
  %v540 = vadd.f32 %v419, %v539
  %541 = vadd.xlane.f32.xlu0 %v540
  %v542 = vpop.xlane.xlu0 %541
  %v543 = vsel %vm98, %v422, 0.0
  %v544 = vadd.f32 %v421, %v543
  %545 = vadd.xlane.f32.xlu0 %v544
  %v546 = vpop.xlane.xlu0 %545
  %v547 = vsel %vm98, %v424, 0.0
  %v548 = vadd.f32 %v423, %v547
  %549 = vadd.xlane.f32.xlu0 %v548
  %v550 = vpop.xlane.xlu0 %549
  %v551 = vsel %vm98, %v426, 0.0
  %v552 = vadd.f32 %v425, %v551
  %553 = vadd.xlane.f32.xlu0 %v552
  %v554 = vpop.xlane.xlu0 %553
  %v555 = vsel %vm98, %v428, 0.0
  %v556 = vadd.f32 %v427, %v555
  %557 = vadd.xlane.f32.xlu0 %v556
  %v558 = vpop.xlane.xlu0 %557
  %v559 = vsel %vm98, %v430, 0.0
  %v560 = vadd.f32 %v429, %v559
  %561 = vadd.xlane.f32.xlu0 %v560
  %v562 = vpop.xlane.xlu0 %561
  %v563 = vsel %vm98, %v432, 0.0
  %v564 = vadd.f32 %v431, %v563
  %565 = vadd.xlane.f32.xlu0 %v564
  %v566 = vpop.xlane.xlu0 %565
  %v567 = vsel %vm98, %v434, 0.0
  %v568 = vadd.f32 %v433, %v567
  %569 = vadd.xlane.f32.xlu0 %v568
  %v570 = vpop.xlane.xlu0 %569
  %v571 = vsel %vm98, %v436, 0.0
  %v572 = vadd.f32 %v435, %v571
  %573 = vadd.xlane.f32.xlu0 %v572
  %v574 = vpop.xlane.xlu0 %573
  %v575 = vsel %vm98, %v438, 0.0
  %v576 = vadd.f32 %v437, %v575
  %577 = vadd.xlane.f32.xlu0 %v576
  %v578 = vpop.xlane.xlu0 %577
  %v579 = vsel %vm98, %v440, 0.0
  %v580 = vadd.f32 %v439, %v579
  %581 = vadd.xlane.f32.xlu0 %v580
  %v582 = vpop.xlane.xlu0 %581
  %v583 = vsel %vm98, %v442, 0.0
  %v584 = vadd.f32 %v441, %v583
  %585 = vadd.xlane.f32.xlu0 %v584
  %v586 = vpop.xlane.xlu0 %585
  %v587 = vsel %vm98, %v444, 0.0
  %v588 = vadd.f32 %v443, %v587
  %589 = vadd.xlane.f32.xlu0 %v588
  %v590 = vpop.xlane.xlu0 %589
  %v591 = vsel %vm98, %v446, 0.0
  %v592 = vadd.f32 %v445, %v591
  %593 = vadd.xlane.f32.xlu0 %v592
  %v594 = vpop.xlane.xlu0 %593
  %v595 = vsel %vm98, %v448, 0.0
  %v596 = vadd.f32 %v447, %v595
  %597 = vadd.xlane.f32.xlu0 %v596
  %v598 = vpop.xlane.xlu0 %597
  %v599 = vsel %vm98, %v450, 0.0
  %v600 = vadd.f32 %v449, %v599
  %601 = vadd.xlane.f32.xlu0 %v600
  %v602 = vpop.xlane.xlu0 %601
  %v603 = vsel %vm98, %v452, 0.0
  %v604 = vadd.f32 %v451, %v603
  %605 = vadd.xlane.f32.xlu0 %v604
  %v606 = vpop.xlane.xlu0 %605
  %v607 = vsel %vm98, %v454, 0.0
  %v608 = vadd.f32 %v453, %v607
  %609 = vadd.xlane.f32.xlu0 %v608
  %v610 = vpop.xlane.xlu0 %609
  %v611 = vsel %vm98, %v456, 0.0
  %v612 = vadd.f32 %v455, %v611
  %613 = vadd.xlane.f32.xlu0 %v612
  %v614 = vpop.xlane.xlu0 %613
  %v615 = vsel %vm98, %v458, 0.0
  %v616 = vadd.f32 %v457, %v615
  %617 = vadd.xlane.f32.xlu0 %v616
  %v618 = vpop.xlane.xlu0 %617
  %v619 = vmul.f32 %v462, 0.0051020407
  %v620 = vmul.f32 %v466, 0.0051020407
  %v621 = vmul.f32 %v470, 0.0051020407
  %v622 = vmul.f32 %v474, 0.0051020407
  %v623 = vmul.f32 %v478, 0.0051020407
  %v624 = vmul.f32 %v482, 0.0051020407
  %v625 = vmul.f32 %v486, 0.0051020407
  %v626 = vmul.f32 %v490, 0.0051020407
  %v627 = vmul.f32 %v494, 0.0051020407
  %v628 = vmul.f32 %v498, 0.0051020407
  %v629 = vmul.f32 %v502, 0.0051020407
  %v630 = vmul.f32 %v506, 0.0051020407
  %v631 = vmul.f32 %v510, 0.0051020407
  %v632 = vmul.f32 %v514, 0.0051020407
  %v633 = vmul.f32 %v518, 0.0051020407
  %v634 = vmul.f32 %v522, 0.0051020407
  %v635 = vmul.f32 %v526, 0.0051020407
  %v636 = vmul.f32 %v530, 0.0051020407
  %v637 = vmul.f32 %v534, 0.0051020407
  %v638 = vmul.f32 %v538, 0.0051020407
  %v639 = vmul.f32 %v542, 0.0051020407
  %v640 = vmul.f32 %v546, 0.0051020407
  %v641 = vmul.f32 %v550, 0.0051020407
  %v642 = vmul.f32 %v554, 0.0051020407
  %v643 = vmul.f32 %v558, 0.0051020407
  %v644 = vmul.f32 %v562, 0.0051020407
  %v645 = vmul.f32 %v566, 0.0051020407
  %v646 = vmul.f32 %v570, 0.0051020407
  %v647 = vmul.f32 %v574, 0.0051020407
  %v648 = vmul.f32 %v578, 0.0051020407
  %v649 = vmul.f32 %v582, 0.0051020407
  %v650 = vmul.f32 %v586, 0.0051020407
  %v651 = vmul.f32 %v590, 0.0051020407
  %v652 = vmul.f32 %v594, 0.0051020407
  %v653 = vmul.f32 %v598, 0.0051020407
  %v654 = vmul.f32 %v602, 0.0051020407
  %v655 = vmul.f32 %v606, 0.0051020407
  %v656 = vmul.f32 %v610, 0.0051020407
  %v657 = vmul.f32 %v614, 0.0051020407
  %v658 = vmul.f32 %v618, 0.0051020407
  %v659 = vld [vmem:[%s0] sm:$0xff]
  %v660 = vld [vmem:[%s0 + $0x8] sm:$0xff]
  %v661 = vld [vmem:[%s0 + $0x10] sm:$0xff]
  %v662 = vld [vmem:[%s0 + $0x18] sm:$0xff]
  %v663 = vld [vmem:[%s0 + $0x20] sm:$0xff]
  %v664 = vld [vmem:[%s0 + $0x28] sm:$0xff]
  %v665 = vld [vmem:[%s0 + $0x30] sm:$0xff]
  %v666 = vld [vmem:[%s0 + $0x38] sm:$0xff]
  %v667 = vld [vmem:[%s0 + $0x40] sm:$0xff]
  %v668 = vld [vmem:[%s0 + $0x48] sm:$0xff]
  %v669 = vld [vmem:[%s0 + $0x50] sm:$0xff]
  %v670 = vld [vmem:[%s0 + $0x58] sm:$0xff]
  %v671 = vld [vmem:[%s0 + $0x60] sm:$0xff]
  %v672 = vld [vmem:[%s0 + $0x68] sm:$0xff]
  %v673 = vld [vmem:[%s0 + $0x70] sm:$0xff]
  %v674 = vld [vmem:[%s0 + $0x78] sm:$0xff]
  %v675 = vld [vmem:[%s0 + $0x80] sm:$0xff]
  %v676 = vld [vmem:[%s0 + $0x88] sm:$0xff]
  %v677 = vld [vmem:[%s0 + $0x90] sm:$0xff]
  %v678 = vld [vmem:[%s0 + $0x98] sm:$0xff]
  %v679 = vld [vmem:[%s0 + $0xa0] sm:$0xff]
  %v680 = vld [vmem:[%s0 + $0xa8] sm:$0xff]
  %v681 = vld [vmem:[%s0 + $0xb0] sm:$0xff]
  %v682 = vld [vmem:[%s0 + $0xb8] sm:$0xff]
  %v683 = vld [vmem:[%s0 + $0xc0] sm:$0xff]
  %v684 = vld [vmem:[%s0 + $0xc8] sm:$0xff]
  %v685 = vld [vmem:[%s0 + $0xd0] sm:$0xff]
  %v686 = vld [vmem:[%s0 + $0xd8] sm:$0xff]
  %v687 = vld [vmem:[%s0 + $0xe0] sm:$0xff]
  %v688 = vld [vmem:[%s0 + $0xe8] sm:$0xff]
  %v689 = vld [vmem:[%s0 + $0xf0] sm:$0xff]
  %v690 = vld [vmem:[%s0 + $0xf8] sm:$0xff]
  %v691 = vld [vmem:[%s0 + $0x100] sm:$0xff]
  %v692 = vld [vmem:[%s0 + $0x108] sm:$0xff]
  %v693 = vld [vmem:[%s0 + $0x110] sm:$0xff]
  %v694 = vld [vmem:[%s0 + $0x118] sm:$0xff]
  %v695 = vld [vmem:[%s0 + $0x120] sm:$0xff]
  %v696 = vld [vmem:[%s0 + $0x128] sm:$0xff]
  %v697 = vld [vmem:[%s0 + $0x130] sm:$0xff]
  %v698 = vld [vmem:[%s0 + $0x138] sm:$0xff]
  %v699 = vadd.f32 %v619, 1e-05
  %v700 = vadd.f32 %v620, 1e-05
  %v701 = vadd.f32 %v621, 1e-05
  %v702 = vadd.f32 %v622, 1e-05
  %v703 = vadd.f32 %v623, 1e-05
  %v704 = vadd.f32 %v624, 1e-05
  %v705 = vadd.f32 %v625, 1e-05
  %v706 = vadd.f32 %v626, 1e-05
  %v707 = vadd.f32 %v627, 1e-05
  %v708 = vadd.f32 %v628, 1e-05
  %v709 = vadd.f32 %v629, 1e-05
  %v710 = vadd.f32 %v630, 1e-05
  %v711 = vadd.f32 %v631, 1e-05
  %v712 = vadd.f32 %v632, 1e-05
  %v713 = vadd.f32 %v633, 1e-05
  %v714 = vadd.f32 %v634, 1e-05
  %v715 = vadd.f32 %v635, 1e-05
  %v716 = vadd.f32 %v636, 1e-05
  %v717 = vadd.f32 %v637, 1e-05
  %v718 = vadd.f32 %v638, 1e-05
  %v719 = vadd.f32 %v639, 1e-05
  %v720 = vadd.f32 %v640, 1e-05
  %v721 = vadd.f32 %v641, 1e-05
  %v722 = vadd.f32 %v642, 1e-05
  %v723 = vadd.f32 %v643, 1e-05
  %v724 = vadd.f32 %v644, 1e-05
  %v725 = vadd.f32 %v645, 1e-05
  %v726 = vadd.f32 %v646, 1e-05
  %v727 = vadd.f32 %v647, 1e-05
  %v728 = vadd.f32 %v648, 1e-05
  %v729 = vadd.f32 %v649, 1e-05
  %v730 = vadd.f32 %v650, 1e-05
  %v731 = vadd.f32 %v651, 1e-05
  %v732 = vadd.f32 %v652, 1e-05
  %v733 = vadd.f32 %v653, 1e-05
  %v734 = vadd.f32 %v654, 1e-05
  %v735 = vadd.f32 %v655, 1e-05
  %v736 = vadd.f32 %v656, 1e-05
  %v737 = vadd.f32 %v657, 1e-05
  %v738 = vadd.f32 %v658, 1e-05
  %v739 = vrsqrt.pop %v699
  %v740 = vrsqrt.pop %v700
  %v741 = vrsqrt.pop %v701
  %v742 = vrsqrt.pop %v702
  %v743 = vrsqrt.pop %v703
  %v744 = vrsqrt.pop %v704
  %v745 = vrsqrt.pop %v705
  %v746 = vrsqrt.pop %v706
  %v747 = vrsqrt.pop %v707
  %v748 = vrsqrt.pop %v708
  %v749 = vrsqrt.pop %v709
  %v750 = vrsqrt.pop %v710
  %v751 = vrsqrt.pop %v711
  %v752 = vrsqrt.pop %v712
  %v753 = vrsqrt.pop %v713
  %v754 = vrsqrt.pop %v714
  %v755 = vrsqrt.pop %v715
  %v756 = vrsqrt.pop %v716
  %v757 = vrsqrt.pop %v717
  %v758 = vrsqrt.pop %v718
  %v759 = vrsqrt.pop %v719
  %v760 = vrsqrt.pop %v720
  %v761 = vrsqrt.pop %v721
  %v762 = vrsqrt.pop %v722
  %v763 = vrsqrt.pop %v723
  %v764 = vrsqrt.pop %v724
  %v765 = vrsqrt.pop %v725
  %v766 = vrsqrt.pop %v726
  %v767 = vrsqrt.pop %v727
  %v768 = vrsqrt.pop %v728
  %v769 = vrsqrt.pop %v729
  %v770 = vrsqrt.pop %v730
  %v771 = vrsqrt.pop %v731
  %v772 = vrsqrt.pop %v732
  %v773 = vrsqrt.pop %v733
  %v774 = vrsqrt.pop %v734
  %v775 = vrsqrt.pop %v735
  %v776 = vrsqrt.pop %v736
  %v777 = vrsqrt.pop %v737
  %v778 = vrsqrt.pop %v738
  %v779 = vmul.f32 %v659, %v739
  %v780 = vmul.f32 %v660, %v740
  %v781 = vmul.f32 %v661, %v741
  %v782 = vmul.f32 %v662, %v742
  %v783 = vmul.f32 %v663, %v743
  %v784 = vmul.f32 %v664, %v744
  %v785 = vmul.f32 %v665, %v745
  %v786 = vmul.f32 %v666, %v746
  %v787 = vmul.f32 %v667, %v747
  %v788 = vmul.f32 %v668, %v748
  %v789 = vmul.f32 %v669, %v749
  %v790 = vmul.f32 %v670, %v750
  %v791 = vmul.f32 %v671, %v751
  %v792 = vmul.f32 %v672, %v752
  %v793 = vmul.f32 %v673, %v753
  %v794 = vmul.f32 %v674, %v754
  %v795 = vmul.f32 %v675, %v755
  %v796 = vmul.f32 %v676, %v756
  %v797 = vmul.f32 %v677, %v757
  %v798 = vmul.f32 %v678, %v758
  %v799 = vmul.f32 %v679, %v759
  %v800 = vmul.f32 %v680, %v760
  %v801 = vmul.f32 %v681, %v761
  %v802 = vmul.f32 %v682, %v762
  %v803 = vmul.f32 %v683, %v763
  %v804 = vmul.f32 %v684, %v764
  %v805 = vmul.f32 %v685, %v765
  %v806 = vmul.f32 %v686, %v766
  %v807 = vmul.f32 %v687, %v767
  %v808 = vmul.f32 %v688, %v768
  %v809 = vmul.f32 %v689, %v769
  %v810 = vmul.f32 %v690, %v770
  %v811 = vmul.f32 %v691, %v771
  %v812 = vmul.f32 %v692, %v772
  %v813 = vmul.f32 %v693, %v773
  %v814 = vmul.f32 %v694, %v774
  %v815 = vmul.f32 %v695, %v775
  %v816 = vmul.f32 %v696, %v776
  %v817 = vmul.f32 %v697, %v777
  %v818 = vmul.f32 %v698, %v778
  %v819 = vld [vmem:[%s1] sm:$0xff]
  %v820 = vld [vmem:[%s1 + $0x8] sm:$0xff]
  %v821 = vld [vmem:[%s1 + $0x10] sm:$0xff]
  %v822 = vld [vmem:[%s1 + $0x18] sm:$0xff]
  %v823 = vld [vmem:[%s1 + $0x20] sm:$0xff]
  %v824 = vld [vmem:[%s1 + $0x28] sm:$0xff]
  %v825 = vld [vmem:[%s1 + $0x30] sm:$0xff]
  %v826 = vld [vmem:[%s1 + $0x38] sm:$0xff]
  %v827 = vld [vmem:[%s1 + $0x40] sm:$0xff]
  %v828 = vld [vmem:[%s1 + $0x48] sm:$0xff]
  %v829 = vld [vmem:[%s1 + $0x50] sm:$0xff]
  %v830 = vld [vmem:[%s1 + $0x58] sm:$0xff]
  %v831 = vld [vmem:[%s1 + $0x60] sm:$0xff]
  %v832 = vld [vmem:[%s1 + $0x68] sm:$0xff]
  %v833 = vld [vmem:[%s1 + $0x70] sm:$0xff]
  %v834 = vld [vmem:[%s1 + $0x78] sm:$0xff]
  %v835 = vld [vmem:[%s1 + $0x80] sm:$0xff]
  %v836 = vld [vmem:[%s1 + $0x88] sm:$0xff]
  %v837 = vld [vmem:[%s1 + $0x90] sm:$0xff]
  %v838 = vld [vmem:[%s1 + $0x98] sm:$0xff]
  %v839 = vld [vmem:[%s1 + $0xa0] sm:$0xff]
  %v840 = vld [vmem:[%s1 + $0xa8] sm:$0xff]
  %v841 = vld [vmem:[%s1 + $0xb0] sm:$0xff]
  %v842 = vld [vmem:[%s1 + $0xb8] sm:$0xff]
  %v843 = vld [vmem:[%s1 + $0xc0] sm:$0xff]
  %v844 = vld [vmem:[%s1 + $0xc8] sm:$0xff]
  %v845 = vld [vmem:[%s1 + $0xd0] sm:$0xff]
  %v846 = vld [vmem:[%s1 + $0xd8] sm:$0xff]
  %v847 = vld [vmem:[%s1 + $0xe0] sm:$0xff]
  %v848 = vld [vmem:[%s1 + $0xe8] sm:$0xff]
  %v849 = vld [vmem:[%s1 + $0xf0] sm:$0xff]
  %v850 = vld [vmem:[%s1 + $0xf8] sm:$0xff]
  %v851 = vld [vmem:[%s1 + $0x100] sm:$0xff]
  %v852 = vld [vmem:[%s1 + $0x108] sm:$0xff]
  %v853 = vld [vmem:[%s1 + $0x110] sm:$0xff]
  %v854 = vld [vmem:[%s1 + $0x118] sm:$0xff]
  %v855 = vld [vmem:[%s1 + $0x120] sm:$0xff]
  %v856 = vld [vmem:[%s1 + $0x128] sm:$0xff]
  %v857 = vld [vmem:[%s1 + $0x130] sm:$0xff]
  %v858 = vld [vmem:[%s1 + $0x138] sm:$0xff]
  %v859 = vmul.f32 %v259, %v779
  %v860 = vmul.f32 %v260, %v780
  %v861 = vmul.f32 %v261, %v781
  %v862 = vmul.f32 %v262, %v782
  %v863 = vmul.f32 %v263, %v783
  %v864 = vmul.f32 %v264, %v784
  %v865 = vmul.f32 %v265, %v785
  %v866 = vmul.f32 %v266, %v786
  %v867 = vmul.f32 %v267, %v787
  %v868 = vmul.f32 %v268, %v788
  %v869 = vmul.f32 %v269, %v789
  %v870 = vmul.f32 %v270, %v790
  %v871 = vmul.f32 %v271, %v791
  %v872 = vmul.f32 %v272, %v792
  %v873 = vmul.f32 %v273, %v793
  %v874 = vmul.f32 %v274, %v794
  %v875 = vmul.f32 %v275, %v795
  %v876 = vmul.f32 %v276, %v796
  %v877 = vmul.f32 %v277, %v797
  %v878 = vmul.f32 %v278, %v798
  %v879 = vmul.f32 %v279, %v799
  %v880 = vmul.f32 %v280, %v800
  %v881 = vmul.f32 %v281, %v801
  %v882 = vmul.f32 %v282, %v802
  %v883 = vmul.f32 %v283, %v803
  %v884 = vmul.f32 %v284, %v804
  %v885 = vmul.f32 %v285, %v805
  %v886 = vmul.f32 %v286, %v806
  %v887 = vmul.f32 %v287, %v807
  %v888 = vmul.f32 %v288, %v808
  %v889 = vmul.f32 %v289, %v809
  %v890 = vmul.f32 %v290, %v810
  %v891 = vmul.f32 %v291, %v811
  %v892 = vmul.f32 %v292, %v812
  %v893 = vmul.f32 %v293, %v813
  %v894 = vmul.f32 %v294, %v814
  %v895 = vmul.f32 %v295, %v815
  %v896 = vmul.f32 %v296, %v816
  %v897 = vmul.f32 %v297, %v817
  %v898 = vmul.f32 %v298, %v818
  %v899 = vsub.f32 %v819, %v859
  %v900 = vsub.f32 %v820, %v860
  %v901 = vsub.f32 %v821, %v861
  %v902 = vsub.f32 %v822, %v862
  %v903 = vsub.f32 %v823, %v863
  %v904 = vsub.f32 %v824, %v864
  %v905 = vsub.f32 %v825, %v865
  %v906 = vsub.f32 %v826, %v866
  %v907 = vsub.f32 %v827, %v867
  %v908 = vsub.f32 %v828, %v868
  %v909 = vsub.f32 %v829, %v869
  %v910 = vsub.f32 %v830, %v870
  %v911 = vsub.f32 %v831, %v871
  %v912 = vsub.f32 %v832, %v872
  %v913 = vsub.f32 %v833, %v873
  %v914 = vsub.f32 %v834, %v874
  %v915 = vsub.f32 %v835, %v875
  %v916 = vsub.f32 %v836, %v876
  %v917 = vsub.f32 %v837, %v877
  %v918 = vsub.f32 %v838, %v878
  %v919 = vsub.f32 %v839, %v879
  %v920 = vsub.f32 %v840, %v880
  %v921 = vsub.f32 %v841, %v881
  %v922 = vsub.f32 %v842, %v882
  %v923 = vsub.f32 %v843, %v883
  %v924 = vsub.f32 %v844, %v884
  %v925 = vsub.f32 %v845, %v885
  %v926 = vsub.f32 %v846, %v886
  %v927 = vsub.f32 %v847, %v887
  %v928 = vsub.f32 %v848, %v888
  %v929 = vsub.f32 %v849, %v889
  %v930 = vsub.f32 %v850, %v890
  %v931 = vsub.f32 %v851, %v891
  %v932 = vsub.f32 %v852, %v892
  %v933 = vsub.f32 %v853, %v893
  %v934 = vsub.f32 %v854, %v894
  %v935 = vsub.f32 %v855, %v895
  %v936 = vsub.f32 %v856, %v896
  %v937 = vsub.f32 %v857, %v897
  %v938 = vsub.f32 %v858, %v898
  %940 = vset.pattern.permute.xlu0 0
  %941 = vperm.xlu0 %940, %v779
  %v942 = vpop.permute.xlu0 %941
  %945 = vset.pattern.permute.xlu0 0
  %946 = vperm.xlu0 %945, %v780
  %v947 = vpop.permute.xlu0 %946
  %950 = vset.pattern.permute.xlu0 0
  %951 = vperm.xlu0 %950, %v781
  %v952 = vpop.permute.xlu0 %951
  %955 = vset.pattern.permute.xlu0 0
  %956 = vperm.xlu0 %955, %v782
  %v957 = vpop.permute.xlu0 %956
  %960 = vset.pattern.permute.xlu0 0
  %961 = vperm.xlu0 %960, %v783
  %v962 = vpop.permute.xlu0 %961
  %965 = vset.pattern.permute.xlu0 0
  %966 = vperm.xlu0 %965, %v784
  %v967 = vpop.permute.xlu0 %966
  %970 = vset.pattern.permute.xlu0 0
  %971 = vperm.xlu0 %970, %v785
  %v972 = vpop.permute.xlu0 %971
  %975 = vset.pattern.permute.xlu0 0
  %976 = vperm.xlu0 %975, %v786
  %v977 = vpop.permute.xlu0 %976
  %980 = vset.pattern.permute.xlu0 0
  %981 = vperm.xlu0 %980, %v787
  %v982 = vpop.permute.xlu0 %981
  %985 = vset.pattern.permute.xlu0 0
  %986 = vperm.xlu0 %985, %v788
  %v987 = vpop.permute.xlu0 %986
  %990 = vset.pattern.permute.xlu0 0
  %991 = vperm.xlu0 %990, %v789
  %v992 = vpop.permute.xlu0 %991
  %995 = vset.pattern.permute.xlu0 0
  %996 = vperm.xlu0 %995, %v790
  %v997 = vpop.permute.xlu0 %996
  %1000 = vset.pattern.permute.xlu0 0
  %1001 = vperm.xlu0 %1000, %v791
  %v1002 = vpop.permute.xlu0 %1001
  %1005 = vset.pattern.permute.xlu0 0
  %1006 = vperm.xlu0 %1005, %v792
  %v1007 = vpop.permute.xlu0 %1006
  %1010 = vset.pattern.permute.xlu0 0
  %1011 = vperm.xlu0 %1010, %v793
  %v1012 = vpop.permute.xlu0 %1011
  %1015 = vset.pattern.permute.xlu0 0
  %1016 = vperm.xlu0 %1015, %v794
  %v1017 = vpop.permute.xlu0 %1016
  %1020 = vset.pattern.permute.xlu0 0
  %1021 = vperm.xlu0 %1020, %v795
  %v1022 = vpop.permute.xlu0 %1021
  %1025 = vset.pattern.permute.xlu0 0
  %1026 = vperm.xlu0 %1025, %v796
  %v1027 = vpop.permute.xlu0 %1026
  %1030 = vset.pattern.permute.xlu0 0
  %1031 = vperm.xlu0 %1030, %v797
  %v1032 = vpop.permute.xlu0 %1031
  %1035 = vset.pattern.permute.xlu0 0
  %1036 = vperm.xlu0 %1035, %v798
  %v1037 = vpop.permute.xlu0 %1036
  %1040 = vset.pattern.permute.xlu0 0
  %1041 = vperm.xlu0 %1040, %v799
  %v1042 = vpop.permute.xlu0 %1041
  %1045 = vset.pattern.permute.xlu0 0
  %1046 = vperm.xlu0 %1045, %v800
  %v1047 = vpop.permute.xlu0 %1046
  %1050 = vset.pattern.permute.xlu0 0
  %1051 = vperm.xlu0 %1050, %v801
  %v1052 = vpop.permute.xlu0 %1051
  %1055 = vset.pattern.permute.xlu0 0
  %1056 = vperm.xlu0 %1055, %v802
  %v1057 = vpop.permute.xlu0 %1056
  %1060 = vset.pattern.permute.xlu0 0
  %1061 = vperm.xlu0 %1060, %v803
  %v1062 = vpop.permute.xlu0 %1061
  %1065 = vset.pattern.permute.xlu0 0
  %1066 = vperm.xlu0 %1065, %v804
  %v1067 = vpop.permute.xlu0 %1066
  %1070 = vset.pattern.permute.xlu0 0
  %1071 = vperm.xlu0 %1070, %v805
  %v1072 = vpop.permute.xlu0 %1071
  %1075 = vset.pattern.permute.xlu0 0
  %1076 = vperm.xlu0 %1075, %v806
  %v1077 = vpop.permute.xlu0 %1076
  %1080 = vset.pattern.permute.xlu0 0
  %1081 = vperm.xlu0 %1080, %v807
  %v1082 = vpop.permute.xlu0 %1081
  %1085 = vset.pattern.permute.xlu0 0
  %1086 = vperm.xlu0 %1085, %v808
  %v1087 = vpop.permute.xlu0 %1086
  %1090 = vset.pattern.permute.xlu0 0
  %1091 = vperm.xlu0 %1090, %v809
  %v1092 = vpop.permute.xlu0 %1091
  %1095 = vset.pattern.permute.xlu0 0
  %1096 = vperm.xlu0 %1095, %v810
  %v1097 = vpop.permute.xlu0 %1096
  %1100 = vset.pattern.permute.xlu0 0
  %1101 = vperm.xlu0 %1100, %v811
  %v1102 = vpop.permute.xlu0 %1101
  %1105 = vset.pattern.permute.xlu0 0
  %1106 = vperm.xlu0 %1105, %v812
  %v1107 = vpop.permute.xlu0 %1106
  %1110 = vset.pattern.permute.xlu0 0
  %1111 = vperm.xlu0 %1110, %v813
  %v1112 = vpop.permute.xlu0 %1111
  %1115 = vset.pattern.permute.xlu0 0
  %1116 = vperm.xlu0 %1115, %v814
  %v1117 = vpop.permute.xlu0 %1116
  %1120 = vset.pattern.permute.xlu0 0
  %1121 = vperm.xlu0 %1120, %v815
  %v1122 = vpop.permute.xlu0 %1121
  %1125 = vset.pattern.permute.xlu0 0
  %1126 = vperm.xlu0 %1125, %v816
  %v1127 = vpop.permute.xlu0 %1126
  %1130 = vset.pattern.permute.xlu0 0
  %1131 = vperm.xlu0 %1130, %v817
  %v1132 = vpop.permute.xlu0 %1131
  %1135 = vset.pattern.permute.xlu0 0
  %1136 = vperm.xlu0 %1135, %v818
  %v1137 = vpop.permute.xlu0 %1136
  %v1139 = vmul.f32 %v18, %v942
  %v1140 = vmul.f32 %v19, %v942
  %v1141 = vmul.f32 %v20, %v947
  %v1142 = vmul.f32 %v21, %v947
  %v1143 = vmul.f32 %v22, %v952
  %v1144 = vmul.f32 %v23, %v952
  %v1145 = vmul.f32 %v24, %v957
  %v1146 = vmul.f32 %v25, %v957
  %v1147 = vmul.f32 %v26, %v962
  %v1148 = vmul.f32 %v27, %v962
  %v1149 = vmul.f32 %v28, %v967
  %v1150 = vmul.f32 %v29, %v967
  %v1151 = vmul.f32 %v30, %v972
  %v1152 = vmul.f32 %v31, %v972
  %v1153 = vmul.f32 %v32, %v977
  %v1154 = vmul.f32 %v33, %v977
  %v1155 = vmul.f32 %v34, %v982
  %v1156 = vmul.f32 %v35, %v982
  %v1157 = vmul.f32 %v36, %v987
  %v1158 = vmul.f32 %v37, %v987
  %v1159 = vmul.f32 %v38, %v992
  %v1160 = vmul.f32 %v39, %v992
  %v1161 = vmul.f32 %v40, %v997
  %v1162 = vmul.f32 %v41, %v997
  %v1163 = vmul.f32 %v42, %v1002
  %v1164 = vmul.f32 %v43, %v1002
  %v1165 = vmul.f32 %v44, %v1007
  %v1166 = vmul.f32 %v45, %v1007
  %v1167 = vmul.f32 %v46, %v1012
  %v1168 = vmul.f32 %v47, %v1012
  %v1169 = vmul.f32 %v48, %v1017
  %v1170 = vmul.f32 %v49, %v1017
  %v1171 = vmul.f32 %v50, %v1022
  %v1172 = vmul.f32 %v51, %v1022
  %v1173 = vmul.f32 %v52, %v1027
  %v1174 = vmul.f32 %v53, %v1027
  %v1175 = vmul.f32 %v54, %v1032
  %v1176 = vmul.f32 %v55, %v1032
  %v1177 = vmul.f32 %v56, %v1037
  %v1178 = vmul.f32 %v57, %v1037
  %v1179 = vmul.f32 %v58, %v1042
  %v1180 = vmul.f32 %v59, %v1042
  %v1181 = vmul.f32 %v60, %v1047
  %v1182 = vmul.f32 %v61, %v1047
  %v1183 = vmul.f32 %v62, %v1052
  %v1184 = vmul.f32 %v63, %v1052
  %v1185 = vmul.f32 %v64, %v1057
  %v1186 = vmul.f32 %v65, %v1057
  %v1187 = vmul.f32 %v66, %v1062
  %v1188 = vmul.f32 %v67, %v1062
  %v1189 = vmul.f32 %v68, %v1067
  %v1190 = vmul.f32 %v69, %v1067
  %v1191 = vmul.f32 %v70, %v1072
  %v1192 = vmul.f32 %v71, %v1072
  %v1193 = vmul.f32 %v72, %v1077
  %v1194 = vmul.f32 %v73, %v1077
  %v1195 = vmul.f32 %v74, %v1082
  %v1196 = vmul.f32 %v75, %v1082
  %v1197 = vmul.f32 %v76, %v1087
  %v1198 = vmul.f32 %v77, %v1087
  %v1199 = vmul.f32 %v78, %v1092
  %v1200 = vmul.f32 %v79, %v1092
  %v1201 = vmul.f32 %v80, %v1097
  %v1202 = vmul.f32 %v81, %v1097
  %v1203 = vmul.f32 %v82, %v1102
  %v1204 = vmul.f32 %v83, %v1102
  %v1205 = vmul.f32 %v84, %v1107
  %v1206 = vmul.f32 %v85, %v1107
  %v1207 = vmul.f32 %v86, %v1112
  %v1208 = vmul.f32 %v87, %v1112
  %v1209 = vmul.f32 %v88, %v1117
  %v1210 = vmul.f32 %v89, %v1117
  %v1211 = vmul.f32 %v90, %v1122
  %v1212 = vmul.f32 %v91, %v1122
  %v1213 = vmul.f32 %v92, %v1127
  %v1214 = vmul.f32 %v93, %v1127
  %v1215 = vmul.f32 %v94, %v1132
  %v1216 = vmul.f32 %v95, %v1132
  %v1217 = vmul.f32 %v96, %v1137
  %v1218 = vmul.f32 %v97, %v1137
  %1220 = vset.pattern.permute.xlu0 0
  %1221 = vperm.xlu0 %1220, %v899
  %v1222 = vpop.permute.xlu0 %1221
  %1225 = vset.pattern.permute.xlu0 0
  %1226 = vperm.xlu0 %1225, %v900
  %v1227 = vpop.permute.xlu0 %1226
  %1230 = vset.pattern.permute.xlu0 0
  %1231 = vperm.xlu0 %1230, %v901
  %v1232 = vpop.permute.xlu0 %1231
  %1235 = vset.pattern.permute.xlu0 0
  %1236 = vperm.xlu0 %1235, %v902
  %v1237 = vpop.permute.xlu0 %1236
  %1240 = vset.pattern.permute.xlu0 0
  %1241 = vperm.xlu0 %1240, %v903
  %v1242 = vpop.permute.xlu0 %1241
  %1245 = vset.pattern.permute.xlu0 0
  %1246 = vperm.xlu0 %1245, %v904
  %v1247 = vpop.permute.xlu0 %1246
  %1250 = vset.pattern.permute.xlu0 0
  %1251 = vperm.xlu0 %1250, %v905
  %v1252 = vpop.permute.xlu0 %1251
  %1255 = vset.pattern.permute.xlu0 0
  %1256 = vperm.xlu0 %1255, %v906
  %v1257 = vpop.permute.xlu0 %1256
  %1260 = vset.pattern.permute.xlu0 0
  %1261 = vperm.xlu0 %1260, %v907
  %v1262 = vpop.permute.xlu0 %1261
  %1265 = vset.pattern.permute.xlu0 0
  %1266 = vperm.xlu0 %1265, %v908
  %v1267 = vpop.permute.xlu0 %1266
  %1270 = vset.pattern.permute.xlu0 0
  %1271 = vperm.xlu0 %1270, %v909
  %v1272 = vpop.permute.xlu0 %1271
  %1275 = vset.pattern.permute.xlu0 0
  %1276 = vperm.xlu0 %1275, %v910
  %v1277 = vpop.permute.xlu0 %1276
  %1280 = vset.pattern.permute.xlu0 0
  %1281 = vperm.xlu0 %1280, %v911
  %v1282 = vpop.permute.xlu0 %1281
  %1285 = vset.pattern.permute.xlu0 0
  %1286 = vperm.xlu0 %1285, %v912
  %v1287 = vpop.permute.xlu0 %1286
  %1290 = vset.pattern.permute.xlu0 0
  %1291 = vperm.xlu0 %1290, %v913
  %v1292 = vpop.permute.xlu0 %1291
  %1295 = vset.pattern.permute.xlu0 0
  %1296 = vperm.xlu0 %1295, %v914
  %v1297 = vpop.permute.xlu0 %1296
  %1300 = vset.pattern.permute.xlu0 0
  %1301 = vperm.xlu0 %1300, %v915
  %v1302 = vpop.permute.xlu0 %1301
  %1305 = vset.pattern.permute.xlu0 0
  %1306 = vperm.xlu0 %1305, %v916
  %v1307 = vpop.permute.xlu0 %1306
  %1310 = vset.pattern.permute.xlu0 0
  %1311 = vperm.xlu0 %1310, %v917
  %v1312 = vpop.permute.xlu0 %1311
  %1315 = vset.pattern.permute.xlu0 0
  %1316 = vperm.xlu0 %1315, %v918
  %v1317 = vpop.permute.xlu0 %1316
  %1320 = vset.pattern.permute.xlu0 0
  %1321 = vperm.xlu0 %1320, %v919
  %v1322 = vpop.permute.xlu0 %1321
  %1325 = vset.pattern.permute.xlu0 0
  %1326 = vperm.xlu0 %1325, %v920
  %v1327 = vpop.permute.xlu0 %1326
  %1330 = vset.pattern.permute.xlu0 0
  %1331 = vperm.xlu0 %1330, %v921
  %v1332 = vpop.permute.xlu0 %1331
  %1335 = vset.pattern.permute.xlu0 0
  %1336 = vperm.xlu0 %1335, %v922
  %v1337 = vpop.permute.xlu0 %1336
  %1340 = vset.pattern.permute.xlu0 0
  %1341 = vperm.xlu0 %1340, %v923
  %v1342 = vpop.permute.xlu0 %1341
  %1345 = vset.pattern.permute.xlu0 0
  %1346 = vperm.xlu0 %1345, %v924
  %v1347 = vpop.permute.xlu0 %1346
  %1350 = vset.pattern.permute.xlu0 0
  %1351 = vperm.xlu0 %1350, %v925
  %v1352 = vpop.permute.xlu0 %1351
  %1355 = vset.pattern.permute.xlu0 0
  %1356 = vperm.xlu0 %1355, %v926
  %v1357 = vpop.permute.xlu0 %1356
  %1360 = vset.pattern.permute.xlu0 0
  %1361 = vperm.xlu0 %1360, %v927
  %v1362 = vpop.permute.xlu0 %1361
  %1365 = vset.pattern.permute.xlu0 0
  %1366 = vperm.xlu0 %1365, %v928
  %v1367 = vpop.permute.xlu0 %1366
  %1370 = vset.pattern.permute.xlu0 0
  %1371 = vperm.xlu0 %1370, %v929
  %v1372 = vpop.permute.xlu0 %1371
  %1375 = vset.pattern.permute.xlu0 0
  %1376 = vperm.xlu0 %1375, %v930
  %v1377 = vpop.permute.xlu0 %1376
  %1380 = vset.pattern.permute.xlu0 0
  %1381 = vperm.xlu0 %1380, %v931
  %v1382 = vpop.permute.xlu0 %1381
  %1385 = vset.pattern.permute.xlu0 0
  %1386 = vperm.xlu0 %1385, %v932
  %v1387 = vpop.permute.xlu0 %1386
  %1390 = vset.pattern.permute.xlu0 0
  %1391 = vperm.xlu0 %1390, %v933
  %v1392 = vpop.permute.xlu0 %1391
  %1395 = vset.pattern.permute.xlu0 0
  %1396 = vperm.xlu0 %1395, %v934
  %v1397 = vpop.permute.xlu0 %1396
  %1400 = vset.pattern.permute.xlu0 0
  %1401 = vperm.xlu0 %1400, %v935
  %v1402 = vpop.permute.xlu0 %1401
  %1405 = vset.pattern.permute.xlu0 0
  %1406 = vperm.xlu0 %1405, %v936
  %v1407 = vpop.permute.xlu0 %1406
  %1410 = vset.pattern.permute.xlu0 0
  %1411 = vperm.xlu0 %1410, %v937
  %v1412 = vpop.permute.xlu0 %1411
  %1415 = vset.pattern.permute.xlu0 0
  %1416 = vperm.xlu0 %1415, %v938
  %v1417 = vpop.permute.xlu0 %1416
  %v1419 = vadd.f32 %v1139, %v1222
  %v1420 = vadd.f32 %v1140, %v1222
  %v1421 = vadd.f32 %v1141, %v1227
  %v1422 = vadd.f32 %v1142, %v1227
  %v1423 = vadd.f32 %v1143, %v1232
  %v1424 = vadd.f32 %v1144, %v1232
  %v1425 = vadd.f32 %v1145, %v1237
  %v1426 = vadd.f32 %v1146, %v1237
  %v1427 = vadd.f32 %v1147, %v1242
  %v1428 = vadd.f32 %v1148, %v1242
  %v1429 = vadd.f32 %v1149, %v1247
  %v1430 = vadd.f32 %v1150, %v1247
  %v1431 = vadd.f32 %v1151, %v1252
  %v1432 = vadd.f32 %v1152, %v1252
  %v1433 = vadd.f32 %v1153, %v1257
  %v1434 = vadd.f32 %v1154, %v1257
  %v1435 = vadd.f32 %v1155, %v1262
  %v1436 = vadd.f32 %v1156, %v1262
  %v1437 = vadd.f32 %v1157, %v1267
  %v1438 = vadd.f32 %v1158, %v1267
  %v1439 = vadd.f32 %v1159, %v1272
  %v1440 = vadd.f32 %v1160, %v1272
  %v1441 = vadd.f32 %v1161, %v1277
  %v1442 = vadd.f32 %v1162, %v1277
  %v1443 = vadd.f32 %v1163, %v1282
  %v1444 = vadd.f32 %v1164, %v1282
  %v1445 = vadd.f32 %v1165, %v1287
  %v1446 = vadd.f32 %v1166, %v1287
  %v1447 = vadd.f32 %v1167, %v1292
  %v1448 = vadd.f32 %v1168, %v1292
  %v1449 = vadd.f32 %v1169, %v1297
  %v1450 = vadd.f32 %v1170, %v1297
  %v1451 = vadd.f32 %v1171, %v1302
  %v1452 = vadd.f32 %v1172, %v1302
  %v1453 = vadd.f32 %v1173, %v1307
  %v1454 = vadd.f32 %v1174, %v1307
  %v1455 = vadd.f32 %v1175, %v1312
  %v1456 = vadd.f32 %v1176, %v1312
  %v1457 = vadd.f32 %v1177, %v1317
  %v1458 = vadd.f32 %v1178, %v1317
  %v1459 = vadd.f32 %v1179, %v1322
  %v1460 = vadd.f32 %v1180, %v1322
  %v1461 = vadd.f32 %v1181, %v1327
  %v1462 = vadd.f32 %v1182, %v1327
  %v1463 = vadd.f32 %v1183, %v1332
  %v1464 = vadd.f32 %v1184, %v1332
  %v1465 = vadd.f32 %v1185, %v1337
  %v1466 = vadd.f32 %v1186, %v1337
  %v1467 = vadd.f32 %v1187, %v1342
  %v1468 = vadd.f32 %v1188, %v1342
  %v1469 = vadd.f32 %v1189, %v1347
  %v1470 = vadd.f32 %v1190, %v1347
  %v1471 = vadd.f32 %v1191, %v1352
  %v1472 = vadd.f32 %v1192, %v1352
  %v1473 = vadd.f32 %v1193, %v1357
  %v1474 = vadd.f32 %v1194, %v1357
  %v1475 = vadd.f32 %v1195, %v1362
  %v1476 = vadd.f32 %v1196, %v1362
  %v1477 = vadd.f32 %v1197, %v1367
  %v1478 = vadd.f32 %v1198, %v1367
  %v1479 = vadd.f32 %v1199, %v1372
  %v1480 = vadd.f32 %v1200, %v1372
  %v1481 = vadd.f32 %v1201, %v1377
  %v1482 = vadd.f32 %v1202, %v1377
  %v1483 = vadd.f32 %v1203, %v1382
  %v1484 = vadd.f32 %v1204, %v1382
  %v1485 = vadd.f32 %v1205, %v1387
  %v1486 = vadd.f32 %v1206, %v1387
  %v1487 = vadd.f32 %v1207, %v1392
  %v1488 = vadd.f32 %v1208, %v1392
  %v1489 = vadd.f32 %v1209, %v1397
  %v1490 = vadd.f32 %v1210, %v1397
  %v1491 = vadd.f32 %v1211, %v1402
  %v1492 = vadd.f32 %v1212, %v1402
  %v1493 = vadd.f32 %v1213, %v1407
  %v1494 = vadd.f32 %v1214, %v1407
  %v1495 = vadd.f32 %v1215, %v1412
  %v1496 = vadd.f32 %v1216, %v1412
  %v1497 = vadd.f32 %v1217, %v1417
  %v1498 = vadd.f32 %v1218, %v1417
  %v1499 = vmax.f32 %v1419, 0.0
  %v1500 = vmax.f32 %v1420, 0.0
  %v1501 = vmax.f32 %v1421, 0.0
  %v1502 = vmax.f32 %v1422, 0.0
  %v1503 = vmax.f32 %v1423, 0.0
  %v1504 = vmax.f32 %v1424, 0.0
  %v1505 = vmax.f32 %v1425, 0.0
  %v1506 = vmax.f32 %v1426, 0.0
  %v1507 = vmax.f32 %v1427, 0.0
  %v1508 = vmax.f32 %v1428, 0.0
  %v1509 = vmax.f32 %v1429, 0.0
  %v1510 = vmax.f32 %v1430, 0.0
  %v1511 = vmax.f32 %v1431, 0.0
  %v1512 = vmax.f32 %v1432, 0.0
  %v1513 = vmax.f32 %v1433, 0.0
  %v1514 = vmax.f32 %v1434, 0.0
  %v1515 = vmax.f32 %v1435, 0.0
  %v1516 = vmax.f32 %v1436, 0.0
  %v1517 = vmax.f32 %v1437, 0.0
  %v1518 = vmax.f32 %v1438, 0.0
  %v1519 = vmax.f32 %v1439, 0.0
  %v1520 = vmax.f32 %v1440, 0.0
  %v1521 = vmax.f32 %v1441, 0.0
  %v1522 = vmax.f32 %v1442, 0.0
  %v1523 = vmax.f32 %v1443, 0.0
  %v1524 = vmax.f32 %v1444, 0.0
  %v1525 = vmax.f32 %v1445, 0.0
  %v1526 = vmax.f32 %v1446, 0.0
  %v1527 = vmax.f32 %v1447, 0.0
  %v1528 = vmax.f32 %v1448, 0.0
  %v1529 = vmax.f32 %v1449, 0.0
  %v1530 = vmax.f32 %v1450, 0.0
  %v1531 = vmax.f32 %v1451, 0.0
  %v1532 = vmax.f32 %v1452, 0.0
  %v1533 = vmax.f32 %v1453, 0.0
  %v1534 = vmax.f32 %v1454, 0.0
  %v1535 = vmax.f32 %v1455, 0.0
  %v1536 = vmax.f32 %v1456, 0.0
  %v1537 = vmax.f32 %v1457, 0.0
  %v1538 = vmax.f32 %v1458, 0.0
  %v1539 = vmax.f32 %v1459, 0.0
  %v1540 = vmax.f32 %v1460, 0.0
  %v1541 = vmax.f32 %v1461, 0.0
  %v1542 = vmax.f32 %v1462, 0.0
  %v1543 = vmax.f32 %v1463, 0.0
  %v1544 = vmax.f32 %v1464, 0.0
  %v1545 = vmax.f32 %v1465, 0.0
  %v1546 = vmax.f32 %v1466, 0.0
  %v1547 = vmax.f32 %v1467, 0.0
  %v1548 = vmax.f32 %v1468, 0.0
  %v1549 = vmax.f32 %v1469, 0.0
  %v1550 = vmax.f32 %v1470, 0.0
  %v1551 = vmax.f32 %v1471, 0.0
  %v1552 = vmax.f32 %v1472, 0.0
  %v1553 = vmax.f32 %v1473, 0.0
  %v1554 = vmax.f32 %v1474, 0.0
  %v1555 = vmax.f32 %v1475, 0.0
  %v1556 = vmax.f32 %v1476, 0.0
  %v1557 = vmax.f32 %v1477, 0.0
  %v1558 = vmax.f32 %v1478, 0.0
  %v1559 = vmax.f32 %v1479, 0.0
  %v1560 = vmax.f32 %v1480, 0.0
  %v1561 = vmax.f32 %v1481, 0.0
  %v1562 = vmax.f32 %v1482, 0.0
  %v1563 = vmax.f32 %v1483, 0.0
  %v1564 = vmax.f32 %v1484, 0.0
  %v1565 = vmax.f32 %v1485, 0.0
  %v1566 = vmax.f32 %v1486, 0.0
  %v1567 = vmax.f32 %v1487, 0.0
  %v1568 = vmax.f32 %v1488, 0.0
  %v1569 = vmax.f32 %v1489, 0.0
  %v1570 = vmax.f32 %v1490, 0.0
  %v1571 = vmax.f32 %v1491, 0.0
  %v1572 = vmax.f32 %v1492, 0.0
  %v1573 = vmax.f32 %v1493, 0.0
  %v1574 = vmax.f32 %v1494, 0.0
  %v1575 = vmax.f32 %v1495, 0.0
  %v1576 = vmax.f32 %v1496, 0.0
  %v1577 = vmax.f32 %v1497, 0.0
  %v1578 = vmax.f32 %v1498, 0.0
  %v1579 = vld [vmem:[%s2] sm:$0xff]
  %v1580 = vld [vmem:[%s2 + $0x8] sm:$0xf]
  %v1581 = vld [vmem:[%s2 + $0xc] sm:$0xff]
  %v1582 = vld [vmem:[%s2 + $0x14] sm:$0xf]
  %v1583 = vld [vmem:[%s2 + $0x18] sm:$0xff]
  %v1584 = vld [vmem:[%s2 + $0x20] sm:$0xf]
  %v1585 = vld [vmem:[%s2 + $0x24] sm:$0xff]
  %v1586 = vld [vmem:[%s2 + $0x2c] sm:$0xf]
  %v1587 = vld [vmem:[%s2 + $0x30] sm:$0xff]
  %v1588 = vld [vmem:[%s2 + $0x38] sm:$0xf]
  %v1589 = vld [vmem:[%s2 + $0x3c] sm:$0xff]
  %v1590 = vld [vmem:[%s2 + $0x44] sm:$0xf]
  %v1591 = vld [vmem:[%s2 + $0x48] sm:$0xff]
  %v1592 = vld [vmem:[%s2 + $0x50] sm:$0xf]
  %v1593 = vld [vmem:[%s2 + $0x54] sm:$0xff]
  %v1594 = vld [vmem:[%s2 + $0x5c] sm:$0xf]
  %v1595 = vld [vmem:[%s2 + $0x60] sm:$0xff]
  %v1596 = vld [vmem:[%s2 + $0x68] sm:$0xf]
  %v1597 = vld [vmem:[%s2 + $0x6c] sm:$0xff]
  %v1598 = vld [vmem:[%s2 + $0x74] sm:$0xf]
  %v1599 = vld [vmem:[%s2 + $0x78] sm:$0xff]
  %v1600 = vld [vmem:[%s2 + $0x80] sm:$0xf]
  %v1601 = vld [vmem:[%s2 + $0x84] sm:$0xff]
  %v1602 = vld [vmem:[%s2 + $0x8c] sm:$0xf]
  %v1603 = vld [vmem:[%s2 + $0x90] sm:$0xff]
  %v1604 = vld [vmem:[%s2 + $0x98] sm:$0xf]
  %v1605 = vld [vmem:[%s2 + $0x9c] sm:$0xff]
  %v1606 = vld [vmem:[%s2 + $0xa4] sm:$0xf]
  %v1607 = vld [vmem:[%s2 + $0xa8] sm:$0xff]
  %v1608 = vld [vmem:[%s2 + $0xb0] sm:$0xf]
  %v1609 = vld [vmem:[%s2 + $0xb4] sm:$0xff]
  %v1610 = vld [vmem:[%s2 + $0xbc] sm:$0xf]
  %v1611 = vpack.c.bf16 %v1501, %v1499
  %v1612 = vpack.c.bf16 %v1502, %v1500
  %v1613 = vpack.c.bf16 %v1505, %v1503
  %v1614 = vpack.c.bf16 %v1506, %v1504
  %v1615 = vpack.c.bf16 %v1509, %v1507
  %v1616 = vpack.c.bf16 %v1510, %v1508
  %v1617 = vpack.c.bf16 %v1513, %v1511
  %v1618 = vpack.c.bf16 %v1514, %v1512
  %v1619 = vpack.c.bf16 %v1517, %v1515
  %v1620 = vpack.c.bf16 %v1518, %v1516
  %v1621 = vpack.c.bf16 %v1521, %v1519
  %v1622 = vpack.c.bf16 %v1522, %v1520
  %v1623 = vpack.c.bf16 %v1525, %v1523
  %v1624 = vpack.c.bf16 %v1526, %v1524
  %v1625 = vpack.c.bf16 %v1529, %v1527
  %v1626 = vpack.c.bf16 %v1530, %v1528
  %v1627 = vpack.c.bf16 %v1533, %v1531
  %v1628 = vpack.c.bf16 %v1534, %v1532
  %v1629 = vpack.c.bf16 %v1537, %v1535
  %v1630 = vpack.c.bf16 %v1538, %v1536
  %v1631 = vpack.c.bf16 %v1541, %v1539
  %v1632 = vpack.c.bf16 %v1542, %v1540
  %v1633 = vpack.c.bf16 %v1545, %v1543
  %v1634 = vpack.c.bf16 %v1546, %v1544
  %v1635 = vpack.c.bf16 %v1549, %v1547
  %v1636 = vpack.c.bf16 %v1550, %v1548
  %v1637 = vpack.c.bf16 %v1553, %v1551
  %v1638 = vpack.c.bf16 %v1554, %v1552
  %v1639 = vpack.c.bf16 %v1557, %v1555
  %v1640 = vpack.c.bf16 %v1558, %v1556
  %v1641 = vpack.c.bf16 %v1561, %v1559
  %v1642 = vpack.c.bf16 %v1562, %v1560
  %v1643 = vpack.c.bf16 %v1565, %v1563
  %v1644 = vpack.c.bf16 %v1566, %v1564
  %v1645 = vpack.c.bf16 %v1569, %v1567
  %v1646 = vpack.c.bf16 %v1570, %v1568
  %v1647 = vpack.c.bf16 %v1573, %v1571
  %v1648 = vpack.c.bf16 %v1574, %v1572
  %v1649 = vpack.c.bf16 %v1577, %v1575
  %v1650 = vpack.c.bf16 %v1578, %v1576
  %v1683 = vunpack.c.l.b16 %v1579
  %v1684 = vunpack.c.h.b16 %v1579
  %v1685 = vunpack.c.l.b16 %v1580
  %v1686 = vunpack.c.l.b16 %v1581
  %v1687 = vunpack.c.h.b16 %v1581
  %v1688 = vunpack.c.l.b16 %v1582
  %v1689 = vunpack.c.l.b16 %v1583
  %v1690 = vunpack.c.h.b16 %v1583
  %v1691 = vunpack.c.l.b16 %v1584
  %v1692 = vunpack.c.l.b16 %v1585
  %v1693 = vunpack.c.h.b16 %v1585
  %v1694 = vunpack.c.l.b16 %v1586
  %v1695 = vunpack.c.l.b16 %v1587
  %v1696 = vunpack.c.h.b16 %v1587
  %v1697 = vunpack.c.l.b16 %v1588
  %v1698 = vunpack.c.l.b16 %v1589
  %v1699 = vunpack.c.h.b16 %v1589
  %v1700 = vunpack.c.l.b16 %v1590
  %v1701 = vunpack.c.l.b16 %v1591
  %v1702 = vunpack.c.h.b16 %v1591
  %v1703 = vunpack.c.l.b16 %v1592
  %v1704 = vunpack.c.l.b16 %v1593
  %v1705 = vunpack.c.h.b16 %v1593
  %v1706 = vunpack.c.l.b16 %v1594
  %v1707 = vunpack.c.l.b16 %v1595
  %v1708 = vunpack.c.h.b16 %v1595
  %v1709 = vunpack.c.l.b16 %v1596
  %v1710 = vunpack.c.l.b16 %v1597
  %v1711 = vunpack.c.h.b16 %v1597
  %v1712 = vunpack.c.l.b16 %v1598
  %v1713 = vunpack.c.l.b16 %v1599
  %v1714 = vunpack.c.h.b16 %v1599
  %v1715 = vunpack.c.l.b16 %v1600
  %v1716 = vunpack.c.l.b16 %v1601
  %v1717 = vunpack.c.h.b16 %v1601
  %v1718 = vunpack.c.l.b16 %v1602
  %v1719 = vunpack.c.l.b16 %v1603
  %v1720 = vunpack.c.h.b16 %v1603
  %v1721 = vunpack.c.l.b16 %v1604
  %v1722 = vunpack.c.l.b16 %v1605
  %v1723 = vunpack.c.h.b16 %v1605
  %v1724 = vunpack.c.l.b16 %v1606
  %v1725 = vunpack.c.l.b16 %v1607
  %v1726 = vunpack.c.h.b16 %v1607
  %v1727 = vunpack.c.l.b16 %v1608
  %v1728 = vunpack.c.l.b16 %v1609
  %v1729 = vunpack.c.h.b16 %v1609
  %v1730 = vunpack.c.l.b16 %v1610
  %v1731 = vpack.c.b16 %v1686, %v1683
  %v1732 = vpack.c.b16 %v1687, %v1684
  %v1733 = vpack.c.b16 %v1688, %v1685
  %v1734 = vpack.c.b16 %v1692, %v1689
  %v1735 = vpack.c.b16 %v1693, %v1690
  %v1736 = vpack.c.b16 %v1694, %v1691
  %v1737 = vpack.c.b16 %v1698, %v1695
  %v1738 = vpack.c.b16 %v1699, %v1696
  %v1739 = vpack.c.b16 %v1700, %v1697
  %v1740 = vpack.c.b16 %v1704, %v1701
  %v1741 = vpack.c.b16 %v1705, %v1702
  %v1742 = vpack.c.b16 %v1706, %v1703
  %v1743 = vpack.c.b16 %v1710, %v1707
  %v1744 = vpack.c.b16 %v1711, %v1708
  %v1745 = vpack.c.b16 %v1712, %v1709
  %v1746 = vpack.c.b16 %v1716, %v1713
  %v1747 = vpack.c.b16 %v1717, %v1714
  %v1748 = vpack.c.b16 %v1718, %v1715
  %v1749 = vpack.c.b16 %v1722, %v1719
  %v1750 = vpack.c.b16 %v1723, %v1720
  %v1751 = vpack.c.b16 %v1724, %v1721
  %v1752 = vpack.c.b16 %v1728, %v1725
  %v1753 = vpack.c.b16 %v1729, %v1726
  %v1754 = vpack.c.b16 %v1730, %v1727
  %vm1771 = vcmask 523264
  %v1773 = vsel %vm1771, %v1733, 0
  %v1776 = vsel %vm1771, %v1736, 0
  %v1779 = vsel %vm1771, %v1739, 0
  %v1782 = vsel %vm1771, %v1742, 0
  %v1785 = vsel %vm1771, %v1745, 0
  %v1788 = vsel %vm1771, %v1748, 0
  %v1791 = vsel %vm1771, %v1751, 0
  %v1794 = vsel %vm1771, %v1754, 0
  %1796 = vmatprep.subr.bf16.mxu0 %v1612
  %1797 = vmatpush1.bf16.msra.mxu0 %v1611
  %1798 = vmatprep.subr.bf16.mxu0 %v1614
  %1799 = vmatpush1.bf16.msra.mxu0 %v1613
  %1800 = vmatprep.subr.bf16.mxu0 %v1616
  %1801 = vmatpush1.bf16.msra.mxu0 %v1615
  %1802 = vmatprep.subr.bf16.mxu0 %v1618
  %1803 = vmatpush1.bf16.msra.mxu0 %v1617
  %1804 = vmatprep.subr.bf16.mxu0 %v1620
  %1805 = vmatpush1.bf16.msra.mxu0 %v1619
  %1806 = vmatprep.subr.bf16.mxu0 %v1622
  %1807 = vmatpush1.bf16.msra.mxu0 %v1621
  %1808 = vmatprep.subr.bf16.mxu0 %v1624
  %1809 = vmatpush1.bf16.msra.mxu0 %v1623
  %1810 = vmatprep.subr.bf16.mxu0 %v1626
  %1811 = vmatpush1.bf16.msra.mxu0 %v1625
  %1812 = vmatprep.subr.bf16.mxu0 %v1628
  %1813 = vmatpush1.bf16.msra.mxu0 %v1627
  %1814 = vmatprep.subr.bf16.mxu0 %v1630
  %1815 = vmatpush1.bf16.msra.mxu0 %v1629
  %1816 = vmatprep.subr.bf16.mxu0 %v1632
  %1817 = vmatpush1.bf16.msra.mxu0 %v1631
  %1818 = vmatprep.subr.bf16.mxu0 %v1634
  %1819 = vmatpush1.bf16.msra.mxu0 %v1633
  %1820 = vmatprep.subr.bf16.mxu0 %v1636
  %1821 = vmatpush1.bf16.msra.mxu0 %v1635
  %1822 = vmatprep.subr.bf16.mxu0 %v1638
  %1823 = vmatpush1.bf16.msra.mxu0 %v1637
  %1824 = vmatprep.subr.bf16.mxu0 %v1640
  %1825 = vmatpush1.bf16.msra.mxu0 %v1639
  %1826 = vmatprep.subr.bf16.mxu0 %v1642
  %1827 = vmatpush1.bf16.msra.mxu0 %v1641
  %1828 = vmatprep.mubr.bf16.mxu0 %v1732
  %1829 = vmatmul.mubr.bf16.gmra.mrb[0].mxu0 %v1731
  %v1830 = vpop.f32.mrb[0].mxu0
  %v1831 = vadd.f32 0.0, %v1830
  %v1832 = vpop.f32.mrb[0].mxu0
  %v1833 = vadd.f32 0.0, %v1832
  %v1834 = vpop.f32.mrb[0].mxu0
  %v1835 = vadd.f32 0.0, %v1834
  %v1836 = vpop.f32.mrb[0].mxu0
  %v1837 = vadd.f32 0.0, %v1836
  %1838 = vmatprep.mubr.bf16.mxu0 %v1735
  %1839 = vmatmul.mubr.bf16.gmra.mrb[0].mxu0 %v1734
  %v1840 = vpop.f32.mrb[0].mxu0
  %v1841 = vadd.f32 0.0, %v1840
  %v1842 = vpop.f32.mrb[0].mxu0
  %v1843 = vadd.f32 0.0, %v1842
  %v1844 = vpop.f32.mrb[0].mxu0
  %v1845 = vadd.f32 0.0, %v1844
  %v1846 = vpop.f32.mrb[0].mxu0
  %v1847 = vadd.f32 0.0, %v1846
  %1848 = vmatprep.mubr.bf16.mxu0 %v1738
  %1849 = vmatmul.mubr.bf16.gmra.mrb[0].mxu0 %v1737
  %v1850 = vpop.f32.mrb[0].mxu0
  %v1851 = vadd.f32 0.0, %v1850
  %v1852 = vpop.f32.mrb[0].mxu0
  %v1853 = vadd.f32 0.0, %v1852
  %v1854 = vpop.f32.mrb[0].mxu0
  %v1855 = vadd.f32 0.0, %v1854
  %v1856 = vpop.f32.mrb[0].mxu0
  %v1857 = vadd.f32 0.0, %v1856
  %1858 = vmatprep.mubr.bf16.mxu0 %v1741
  %1859 = vmatmul.mubr.bf16.gmra.mrb[0].mxu0 %v1740
  %v1860 = vpop.f32.mrb[0].mxu0
  %v1861 = vadd.f32 0.0, %v1860
  %v1862 = vpop.f32.mrb[0].mxu0
  %v1863 = vadd.f32 0.0, %v1862
  %v1864 = vpop.f32.mrb[0].mxu0
  %v1865 = vadd.f32 0.0, %v1864
  %v1866 = vpop.f32.mrb[0].mxu0
  %v1867 = vadd.f32 0.0, %v1866
  %1868 = vmatprep.mubr.bf16.mxu0 %v1744
  %1869 = vmatmul.mubr.bf16.gmra.mrb[0].mxu0 %v1743
  %v1870 = vpop.f32.mrb[0].mxu0
  %v1871 = vadd.f32 0.0, %v1870
  %v1872 = vpop.f32.mrb[0].mxu0
  %v1873 = vadd.f32 0.0, %v1872
  %v1874 = vpop.f32.mrb[0].mxu0
  %v1875 = vadd.f32 0.0, %v1874
  %v1876 = vpop.f32.mrb[0].mxu0
  %v1877 = vadd.f32 0.0, %v1876
  %1878 = vmatprep.mubr.bf16.mxu0 %v1747
  %1879 = vmatmul.mubr.bf16.gmra.mrb[0].mxu0 %v1746
  %v1880 = vpop.f32.mrb[0].mxu0
  %v1881 = vadd.f32 0.0, %v1880
  %v1882 = vpop.f32.mrb[0].mxu0
  %v1883 = vadd.f32 0.0, %v1882
  %v1884 = vpop.f32.mrb[0].mxu0
  %v1885 = vadd.f32 0.0, %v1884
  %v1886 = vpop.f32.mrb[0].mxu0
  %v1887 = vadd.f32 0.0, %v1886
  %1888 = vmatprep.mubr.bf16.mxu0 %v1750
  %1889 = vmatmul.mubr.bf16.gmra.mrb[0].mxu0 %v1749
  %v1890 = vpop.f32.mrb[0].mxu0
  %v1891 = vadd.f32 0.0, %v1890
  %v1892 = vpop.f32.mrb[0].mxu0
  %v1893 = vadd.f32 0.0, %v1892
  %v1894 = vpop.f32.mrb[0].mxu0
  %v1895 = vadd.f32 0.0, %v1894
  %v1896 = vpop.f32.mrb[0].mxu0
  %v1897 = vadd.f32 0.0, %v1896
  %1898 = vmatprep.mubr.bf16.mxu0 %v1753
  %1899 = vmatmul.mubr.bf16.gmra.mrb[0].mxu0 %v1752
  %v1900 = vpop.f32.mrb[0].mxu0
  %v1901 = vadd.f32 0.0, %v1900
  %v1902 = vpop.f32.mrb[0].mxu0
  %v1903 = vadd.f32 0.0, %v1902
  %v1904 = vpop.f32.mrb[0].mxu0
  %v1905 = vadd.f32 0.0, %v1904
  %v1906 = vpop.f32.mrb[0].mxu0
  %v1907 = vadd.f32 0.0, %v1906
  %1908 = vdwg.mxu0
  %1909 = vmatprep.subr.bf16.mxu0 %v1644
  %1910 = vmatpush1.bf16.msra.mxu0 %v1643
  %1911 = vmatprep.subr.bf16.mxu0 %v1646
  %1912 = vmatpush1.bf16.msra.mxu0 %v1645
  %1913 = vmatprep.subr.bf16.mxu0 %v1648
  %1914 = vmatpush1.bf16.msra.mxu0 %v1647
  %1915 = vmatprep.subr.bf16.mxu0 %v1650
  %1916 = vmatpush1.bf16.msra.mxu0 %v1649
  %1917 = vmatprep.subr.bf16.mxu0 0
  %1918 = vmatpush1.bf16.msra.mxu0 0
  %1919 = vmatprep.subr.bf16.mxu0 0
  %1920 = vmatpush1.bf16.msra.mxu0 0
  %1921 = vmatprep.subr.bf16.mxu0 0
  %1922 = vmatpush1.bf16.msra.mxu0 0
  %1923 = vmatprep.subr.bf16.mxu0 0
  %1924 = vmatpush1.bf16.msra.mxu0 0
  %1925 = vmatprep.subr.bf16.mxu0 0
  %1926 = vmatpush1.bf16.msra.mxu0 0
  %1927 = vmatprep.subr.bf16.mxu0 0
  %1928 = vmatpush1.bf16.msra.mxu0 0
  %1929 = vmatprep.subr.bf16.mxu0 0
  %1930 = vmatpush1.bf16.msra.mxu0 0
  %1931 = vmatprep.subr.bf16.mxu0 0
  %1932 = vmatpush1.bf16.msra.mxu0 0
  %1933 = vmatprep.subr.bf16.mxu0 0
  %1934 = vmatpush1.bf16.msra.mxu0 0
  %1935 = vmatprep.subr.bf16.mxu0 0
  %1936 = vmatpush1.bf16.msra.mxu0 0
  %1937 = vmatprep.subr.bf16.mxu0 0
  %1938 = vmatpush1.bf16.msra.mxu0 0
  %1939 = vmatprep.subr.bf16.mxu0 0
  %1940 = vmatpush1.bf16.msra.mxu0 0
  %1941 = vmatprep.mubr.bf16.mxu0 0
  %1942 = vmatmul.mubr.bf16.gmra.mrb[0].mxu0 %v1773
  %v1943 = vpop.f32.mrb[0].mxu0
  %v1944 = vadd.f32 %v1831, %v1943
  %v1945 = vpop.f32.mrb[0].mxu0
  %v1946 = vadd.f32 %v1833, %v1945
  %v1947 = vpop.f32.mrb[0].mxu0
  %v1948 = vadd.f32 %v1835, %v1947
  %v1949 = vpop.f32.mrb[0].mxu0
  %v1950 = vadd.f32 %v1837, %v1949
  %1951 = vmatprep.mubr.bf16.mxu0 0
  %1952 = vmatmul.mubr.bf16.gmra.mrb[0].mxu0 %v1776
  %v1953 = vpop.f32.mrb[0].mxu0
  %v1954 = vadd.f32 %v1841, %v1953
  %v1955 = vpop.f32.mrb[0].mxu0
  %v1956 = vadd.f32 %v1843, %v1955
  %v1957 = vpop.f32.mrb[0].mxu0
  %v1958 = vadd.f32 %v1845, %v1957
  %v1959 = vpop.f32.mrb[0].mxu0
  %v1960 = vadd.f32 %v1847, %v1959
  %1961 = vmatprep.mubr.bf16.mxu0 0
  %1962 = vmatmul.mubr.bf16.gmra.mrb[0].mxu0 %v1779
  %v1963 = vpop.f32.mrb[0].mxu0
  %v1964 = vadd.f32 %v1851, %v1963
  %v1965 = vpop.f32.mrb[0].mxu0
  %v1966 = vadd.f32 %v1853, %v1965
  %v1967 = vpop.f32.mrb[0].mxu0
  %v1968 = vadd.f32 %v1855, %v1967
  %v1969 = vpop.f32.mrb[0].mxu0
  %v1970 = vadd.f32 %v1857, %v1969
  %1971 = vmatprep.mubr.bf16.mxu0 0
  %1972 = vmatmul.mubr.bf16.gmra.mrb[0].mxu0 %v1782
  %v1973 = vpop.f32.mrb[0].mxu0
  %v1974 = vadd.f32 %v1861, %v1973
  %v1975 = vpop.f32.mrb[0].mxu0
  %v1976 = vadd.f32 %v1863, %v1975
  %v1977 = vpop.f32.mrb[0].mxu0
  %v1978 = vadd.f32 %v1865, %v1977
  %v1979 = vpop.f32.mrb[0].mxu0
  %v1980 = vadd.f32 %v1867, %v1979
  %1981 = vmatprep.mubr.bf16.mxu0 0
  %1982 = vmatmul.mubr.bf16.gmra.mrb[0].mxu0 %v1785
  %v1983 = vpop.f32.mrb[0].mxu0
  %v1984 = vadd.f32 %v1871, %v1983
  %v1985 = vpop.f32.mrb[0].mxu0
  %v1986 = vadd.f32 %v1873, %v1985
  %v1987 = vpop.f32.mrb[0].mxu0
  %v1988 = vadd.f32 %v1875, %v1987
  %v1989 = vpop.f32.mrb[0].mxu0
  %v1990 = vadd.f32 %v1877, %v1989
  %1991 = vmatprep.mubr.bf16.mxu0 0
  %1992 = vmatmul.mubr.bf16.gmra.mrb[0].mxu0 %v1788
  %v1993 = vpop.f32.mrb[0].mxu0
  %v1994 = vadd.f32 %v1881, %v1993
  %v1995 = vpop.f32.mrb[0].mxu0
  %v1996 = vadd.f32 %v1883, %v1995
  %v1997 = vpop.f32.mrb[0].mxu0
  %v1998 = vadd.f32 %v1885, %v1997
  %v1999 = vpop.f32.mrb[0].mxu0
  %v2000 = vadd.f32 %v1887, %v1999
  %2001 = vmatprep.mubr.bf16.mxu0 0
  %2002 = vmatmul.mubr.bf16.gmra.mrb[0].mxu0 %v1791
  %v2003 = vpop.f32.mrb[0].mxu0
  %v2004 = vadd.f32 %v1891, %v2003
  %v2005 = vpop.f32.mrb[0].mxu0
  %v2006 = vadd.f32 %v1893, %v2005
  %v2007 = vpop.f32.mrb[0].mxu0
  %v2008 = vadd.f32 %v1895, %v2007
  %v2009 = vpop.f32.mrb[0].mxu0
  %v2010 = vadd.f32 %v1897, %v2009
  %2011 = vmatprep.mubr.bf16.mxu0 0
  %2012 = vmatmul.mubr.bf16.gmra.mrb[0].mxu0 %v1794
  %v2013 = vpop.f32.mrb[0].mxu0
  %v2014 = vadd.f32 %v1901, %v2013
  %v2015 = vpop.f32.mrb[0].mxu0
  %v2016 = vadd.f32 %v1903, %v2015
  %v2017 = vpop.f32.mrb[0].mxu0
  %v2018 = vadd.f32 %v1905, %v2017
  %v2019 = vpop.f32.mrb[0].mxu0
  %v2020 = vadd.f32 %v1907, %v2019
  %2021 = vdwg.mxu0
  %2022 = vst [vmem:[%s4] sm:$0xff] %v1944
  %2023 = vst.msk [vmem:[%s4 + $0x8] sm:$0xff] %vm98, %v1946
  %2024 = vst [vmem:[%s4 + $0x10] sm:$0xff] %v1948
  %2025 = vst.msk [vmem:[%s4 + $0x18] sm:$0xff] %vm98, %v1950
  %2026 = vst [vmem:[%s4 + $0x20] sm:$0xff] %v1954
  %2027 = vst.msk [vmem:[%s4 + $0x28] sm:$0xff] %vm98, %v1956
  %2028 = vst [vmem:[%s4 + $0x30] sm:$0xff] %v1958
  %2029 = vst.msk [vmem:[%s4 + $0x38] sm:$0xff] %vm98, %v1960
  %2030 = vst [vmem:[%s4 + $0x40] sm:$0xff] %v1964
  %2031 = vst.msk [vmem:[%s4 + $0x48] sm:$0xff] %vm98, %v1966
  %2032 = vst [vmem:[%s4 + $0x50] sm:$0xff] %v1968
  %2033 = vst.msk [vmem:[%s4 + $0x58] sm:$0xff] %vm98, %v1970
  %2034 = vst [vmem:[%s4 + $0x60] sm:$0xff] %v1974
  %2035 = vst.msk [vmem:[%s4 + $0x68] sm:$0xff] %vm98, %v1976
  %2036 = vst [vmem:[%s4 + $0x70] sm:$0xff] %v1978
  %2037 = vst.msk [vmem:[%s4 + $0x78] sm:$0xff] %vm98, %v1980
  %2038 = vst [vmem:[%s4 + $0x80] sm:$0xff] %v1984
  %2039 = vst.msk [vmem:[%s4 + $0x88] sm:$0xff] %vm98, %v1986
  %2040 = vst [vmem:[%s4 + $0x90] sm:$0xff] %v1988
  %2041 = vst.msk [vmem:[%s4 + $0x98] sm:$0xff] %vm98, %v1990
  %2042 = vst [vmem:[%s4 + $0xa0] sm:$0xff] %v1994
  %2043 = vst.msk [vmem:[%s4 + $0xa8] sm:$0xff] %vm98, %v1996
  %2044 = vst [vmem:[%s4 + $0xb0] sm:$0xff] %v1998
  %2045 = vst.msk [vmem:[%s4 + $0xb8] sm:$0xff] %vm98, %v2000
  %2046 = vst [vmem:[%s4 + $0xc0] sm:$0xff] %v2004
  %2047 = vst.msk [vmem:[%s4 + $0xc8] sm:$0xff] %vm98, %v2006
  %2048 = vst [vmem:[%s4 + $0xd0] sm:$0xff] %v2008
  %2049 = vst.msk [vmem:[%s4 + $0xd8] sm:$0xff] %vm98, %v2010
  %2050 = vst [vmem:[%s4 + $0xe0] sm:$0xff] %v2014
  %2051 = vst.msk [vmem:[%s4 + $0xe8] sm:$0xff] %vm98, %v2016
  %2052 = vst [vmem:[%s4 + $0xf0] sm:$0xff] %v2018
  %2053 = vst.msk [vmem:[%s4 + $0xf8] sm:$0xff] %vm98, %v2020
  // Predicated region
  $region18: #{tpu_custom_call.1} parent=0 // pred_check
    _
  $region19: #{tpu_custom_call.1} parent=0 // pred_check_branch
    %2055 = sbr.rel (0) target = $region21
  $region20: #{tpu_custom_call.1} parent=0 // pred_region
    _
  $region21: #{tpu_custom_call.1} parent=0 // pred_fallthru
    _
  // Predicated region
  $region22: #{tpu_custom_call.1} parent=0 // pred_check
    _
  $region23: #{tpu_custom_call.1} parent=0 // pred_check_branch
    %2057 = sbr.rel (0) target = $region25
  $region24: #{tpu_custom_call.1} parent=0 // pred_region
    _
  $region25: #{tpu_custom_call.1} parent=0 // pred_fallthru
    _

</llo_original>
